<compile_context>
chip_gen: v5e
topology: v5e:2x2
jax: 0.10.0
libtpu: 0.0.40
codegen_flags: <defaults>
</compile_context>

<pallas_src>
import jax
import jax.numpy as jnp
from jax import lax
from jax.experimental import pallas as pl
from jax.experimental.pallas import tpu as pltpu

# --- sizes (small, consistent with the module: use_src=True path) -----------
S = 8                 # seqlen
B = 4                 # batch
I_DIM = 22            # args.i_dim
H = 32                # args.h_dim
D = I_DIM - 6         # channel dim after stripping the 6 "src" features
SB = S * B
EPS = 1e-5
LANES = 128
ACT_LANES = 48        # [Xin(16) | Min(16) | p8(8) | mask(1) | pad(7)]
FRONT_COLS = D + 2 * H  # 80: [xc(16) | res(32) | h0(32)]

# --- weight-slab row offsets (bf16 slab; all offsets multiples of 16) --------
OFF_FRONT  = 0        # (48, 80)  fused comb + down(Xin) + i2h(p_info)
OFF_CONV1  = 48       # (D,  H)
OFF_CONV2  = 64       # (H,  H)
OFF_R1_IH  = 96       # (H, 128)  [0.5*W_ih_r | 0.5*W_ih_z | W_ih_n | W_c2x]
OFF_R1_HH  = 128      # (H,  96)  [0.5*W_hh_r | 0.5*W_hh_z | 0.5*W_hh_n]
OFF_R1_C2H = 160      # (H,  H)   com2 h-half
OFF_R2_IH  = 192
OFF_R2_HH  = 224
OFF_R2_C2H = 256
OFF_NN1    = 288      # (H, 8)
OFF_NN2    = 320      # (8, 2)
W_ROWS     = 328

# --- bias/affine-slab rows (f32) ---------------------------------------------
V_B_FRONT = 0                                   # [b_comb | b_down | b_i2h]  (80 lanes)
V_B_CONV1, V_G_BN1, V_BE_BN1 = 1, 2, 3
V_B_CONV2, V_G_BN2, V_BE_BN2 = 4, 5, 6
V_R1_BX, V_R1_BHN = 7, 8                        # BX: [0.5*(b_ih+b_hh)_rz | b_ih_n | b_c2]
V_R2_BX, V_R2_BHN = 9, 10                       # BHN: 0.5*b_hh_n
V_G_LN1, V_B_LN1, V_G_LN2, V_B_LN2 = 11, 12, 13, 14
V_G_LN3, V_B_LN3, V_B_NN1, V_B_NN2 = 15, 16, 17, 18
V_ROWS = 24


def cnngru_kernel(act_ref, w_ref, v_ref, out_ref):
    f32, bf16 = jnp.float32, jnp.bfloat16

    def mm(a, w):
        # MXU in bf16 (weights already bf16 in the slab), f32 accumulation.
        return jnp.dot(a.astype(bf16), w, preferred_element_type=f32)

    def vrow(r, n):
        return v_ref[r:r + 1, :n]                               # (1, n) f32

    def batchnorm(x, g, b):                                     # training-mode stats
        mu = jnp.mean(x, axis=0, keepdims=True)
        var = jnp.mean((x - mu) ** 2, axis=0, keepdims=True)
        return (x - mu) * lax.rsqrt(var + EPS) * g + b

    def layernorm(x, g, b):
        mu = jnp.mean(x, axis=-1, keepdims=True)
        var = jnp.mean((x - mu) ** 2, axis=-1, keepdims=True)
        return (x - mu) * lax.rsqrt(var + EPS) * g + b

    act = act_ref[...]                                          # (SB, 48) f32

    # ---------------- fused comb + down + i2h in ONE matmul ------------------
    front = mm(act, w_ref[OFF_FRONT:OFF_FRONT + ACT_LANES, :FRONT_COLS]) \
        + vrow(V_B_FRONT, FRONT_COLS)                           # (SB, 80)
    xc = front[:, :D]                                           # comb(cat[Xin, Min])
    res = front[:, D:D + H]                                     # down(Xin) residual
    h0 = front[:B, D + H:D + 2 * H]                             # i2h(p_info), (B, H)

    # ---------------- conv1 -> bn1 -> relu -> conv2 -> bn2 -> +res -----------
    c1 = mm(xc, w_ref[OFF_CONV1:OFF_CONV1 + D, :H]) + vrow(V_B_CONV1, H)
    c1 = jnp.maximum(batchnorm(c1, vrow(V_G_BN1, H), vrow(V_BE_BN1, H)), 0.0)
    c2 = mm(c1, w_ref[OFF_CONV2:OFF_CONV2 + H, :H]) + vrow(V_B_CONV2, H)
    hx = batchnorm(c2, vrow(V_G_BN2, H), vrow(V_BE_BN2, H)) + res          # (SB, H)

    # 0.5*mask, pre-broadcast once; the 0.5 absorbs the sigmoid->tanh rescale of (1-z)
    m_half = jnp.broadcast_to(0.5 * act[:, 2 * D + 8:2 * D + 9], (SB, H))

    # ---------------- ModGRU (PyTorch GRUCell gate order: r, z, n) -----------
    def run_gru(x_seq, off_ih, off_hh, off_c2h, r_bx, r_bhn):
        # Hoisted x-dependent work for the whole sequence, one (SB,H)@(H,128) matmul:
        #   lanes   0: 64 -> 0.5*(W_ir|W_iz)x + 0.5*(b_i+b_h)_rz   (tanh-form sigmoid args)
        #   lanes  64: 96 -> W_in x + b_in
        #   lanes  96:128 -> W_c2x x + b_c2   (com2 x-half rides the MXU pad lanes for free)
        xg = mm(x_seq, w_ref[off_ih:off_ih + H, :]) + v_ref[r_bx:r_bx + 1, :]   # (SB, 128)
        w_hh = w_ref[off_hh:off_hh + H, :3 * H]                  # bf16 (H, 96), loaded once
        bhn = jnp.broadcast_to(vrow(r_bhn, H), (B, H))           # 0.5*b_hh_n

        # TODO(synk): stationary-RHS MXU (pltpu.matmul_push_rhs / matmul_acc_lhs /
        # matmul_pop, MRB addressed pops on v7x) would shave the per-step RHS push;
        # kept as jnp.dot for portability.
        h = h0
        hs = []
        for i in range(S):                                       # fully unrolled, S static
            gi = xg[i * B:(i + 1) * B]                           # (B, 128) static row slice
            hg = mm(h, w_hh)                                     # only per-step matmul
            t = jnp.tanh(gi[:, :2 * H] + hg[:, :2 * H])          # one EUP op covers r and z
            hn = hg[:, 2 * H:3 * H] + bhn                        # off the tanh chain
            n = jnp.tanh(gi[:, 2 * H:3 * H] + (t[:, :H] + 1.0) * hn)
            # fused z-gate update + mask blend: h <- h + m*(1-z)*(n-h)
            h = h + (m_half[i * B:(i + 1) * B] * (1.0 - t[:, H:2 * H])) * (n - h)
            hs.append(h)

        # deferred com2: x-half (and b_c2) already sit in xg lanes 96:128
        h_seq = jnp.concatenate(hs, axis=0)                      # (SB, H)
        return xg[:, 3 * H:4 * H] + mm(h_seq, w_ref[off_c2h:off_c2h + H, :H])

    o1 = layernorm(run_gru(hx, OFF_R1_IH, OFF_R1_HH, OFF_R1_C2H, V_R1_BX, V_R1_BHN),
                   vrow(V_G_LN1, H), vrow(V_B_LN1, H))
    # rnn2 re-starts from h0, as in the reference
    o2 = layernorm(run_gru(o1, OFF_R2_IH, OFF_R2_HH, OFF_R2_C2H, V_R2_BX, V_R2_BHN),
                   vrow(V_G_LN2, H), vrow(V_B_LN2, H))

    # nn1 -> relu -> lnorm3 -> nn2
    y = jnp.maximum(mm(o2, w_ref[OFF_NN1:OFF_NN1 + H, :8]) + vrow(V_B_NN1, 8), 0.0)
    y = layernorm(y, vrow(V_G_LN3, 8), vrow(V_B_LN3, 8))
    out_ref[...] = mm(y, w_ref[OFF_NN2:OFF_NN2 + 8, :2]) + vrow(V_B_NN2, 2)


@jax.jit
def cnngru_forward(X, M, mask, w_slab, v_slab):
    f32 = jnp.float32
    # pre-pack all activations into one lane-dense slab -> a single activation DMA
    xin = X[:, :, :D].reshape(SB, D)
    minn = M[:, :, :D].reshape(SB, D)
    p8 = jnp.pad(X[0:1, :, D:], ((0, S - 1), (0, 0), (0, 2))).reshape(SB, 8)
    mcol = mask.reshape(SB, 1).astype(f32)
    act = jnp.concatenate(
        [xin, minn, p8, mcol, jnp.zeros((SB, ACT_LANES - (2 * D + 9)), f32)], axis=-1)

    vmem = pl.BlockSpec(memory_space=pltpu.MemorySpace.VMEM)
    out = pl.pallas_call(
        cnngru_kernel,
        out_shape=jax.ShapeDtypeStruct((SB, 2), jnp.float32),
        in_specs=[vmem, vmem, vmem],
        out_specs=vmem,
    )(act, w_slab, v_slab)
    return out.reshape(S, B, 2)


def make_params(key):
    """Deterministic synthetic parameters in (in, out) layout; GRU gate order [r|z|n]."""
    keys = iter(jax.random.split(key, 40))
    nk = lambda shape: 0.1 * jax.random.normal(next(keys), shape, jnp.float32)
    ones = lambda shape: jnp.ones(shape, jnp.float32)
    zeros = lambda shape: jnp.zeros(shape, jnp.float32)
    p = {
        "w_i2h": nk((6, H)), "b_i2h": nk((1, H)),
        "w_comb": nk((2 * D, D)), "b_comb": nk((1, D)),
        "w_conv1": nk((D, H)), "b_conv1": nk((1, H)),
        "g_bn1": ones((1, H)), "be_bn1": zeros((1, H)),
        "w_conv2": nk((H, H)), "b_conv2": nk((1, H)),
        "g_bn2": ones((1, H)), "be_bn2": zeros((1, H)),
        "w_down": nk((D, H)), "b_down": nk((1, H)),
        "g_ln1": ones((1, H)), "b_ln1": zeros((1, H)),
        "g_ln2": ones((1, H)), "b_ln2": zeros((1, H)),
        "g_ln3": ones((1, 8)), "b_ln3": zeros((1, 8)),
        "w_nn1": nk((H, 8)), "b_nn1": nk((1, 8)),
        "w_nn2": nk((8, 2)), "b_nn2": nk((1, 2)),
    }
    for r in ("rnn1", "rnn2"):
        p[f"{r}_w_ih"] = nk((H, 3 * H))   # W_ih, gates [r|z|n]
        p[f"{r}_w_hh"] = nk((H, 3 * H))   # W_hh, gates [r|z|n]
        p[f"{r}_b_ih"] = nk((1, 3 * H))
        p[f"{r}_b_hh"] = nk((1, 3 * H))
        p[f"{r}_w_c2x"] = nk((H, H))      # com2, X half
        p[f"{r}_w_c2h"] = nk((H, H))      # com2, h half
        p[f"{r}_b_c2"] = nk((1, H))
    return p


def pack_params(p):
    """Pack the ~55 small tensors into one bf16 weight slab and one f32 bias slab."""
    f32 = jnp.float32

    # ---- weight slab (bf16) --------------------------------------------------
    w = jnp.zeros((W_ROWS, LANES), f32)

    # fused front block: comb over [Xin|Min], down over Xin only, i2h over p_info lanes
    front = jnp.zeros((ACT_LANES, FRONT_COLS), f32)
    front = front.at[0:2 * D, 0:D].set(p["w_comb"])
    front = front.at[0:D, D:D + H].set(p["w_down"])
    front = front.at[2 * D:2 * D + 6, D + H:D + 2 * H].set(p["w_i2h"])
    w = w.at[OFF_FRONT:OFF_FRONT + ACT_LANES, :FRONT_COLS].set(front)

    w = w.at[OFF_CONV1:OFF_CONV1 + D, :H].set(p["w_conv1"])
    w = w.at[OFF_CONV2:OFF_CONV2 + H, :H].set(p["w_conv2"])

    for r, off_ih, off_hh, off_c2h in (("rnn1", OFF_R1_IH, OFF_R1_HH, OFF_R1_C2H),
                                       ("rnn2", OFF_R2_IH, OFF_R2_HH, OFF_R2_C2H)):
        w_ih, w_hh = p[f"{r}_w_ih"], p[f"{r}_w_hh"]
        # 0.5 on the r/z gate columns folds the sigmoid->tanh rescale into the weights;
        # W_c2x rides the (previously zero) pad lanes 96:128.
        ih_block = jnp.concatenate(
            [0.5 * w_ih[:, :2 * H], w_ih[:, 2 * H:], p[f"{r}_w_c2x"]], axis=1)   # (H, 128)
        w = w.at[off_ih:off_ih + H, :].set(ih_block)
        w = w.at[off_hh:off_hh + H, :3 * H].set(0.5 * w_hh)      # all gates scaled 0.5
        w = w.at[off_c2h:off_c2h + H, :H].set(p[f"{r}_w_c2h"])

    w = w.at[OFF_NN1:OFF_NN1 + H, :8].set(p["w_nn1"])
    w = w.at[OFF_NN2:OFF_NN2 + 8, :2].set(p["w_nn2"])
    w_slab = w.astype(jnp.bfloat16)

    # ---- bias/affine slab (f32) ----------------------------------------------
    v = jnp.zeros((V_ROWS, LANES), f32)

    def srow(v, idx, a):
        a = a.reshape(-1)
        return v.at[idx, :a.shape[0]].set(a)

    v = srow(v, V_B_FRONT, jnp.concatenate([p["b_comb"], p["b_down"], p["b_i2h"]], axis=1))
    v = srow(v, V_B_CONV1, p["b_conv1"]); v = srow(v, V_G_BN1, p["g_bn1"]); v = srow(v, V_BE_BN1, p["be_bn1"])
    v = srow(v, V_B_CONV2, p["b_conv2"]); v = srow(v, V_G_BN2, p["g_bn2"]); v = srow(v, V_BE_BN2, p["be_bn2"])
    for r, r_bx, r_bhn in (("rnn1", V_R1_BX, V_R1_BHN), ("rnn2", V_R2_BX, V_R2_BHN)):
        b_ih, b_hh, b_c2 = p[f"{r}_b_ih"], p[f"{r}_b_hh"], p[f"{r}_b_c2"]
        # r,z gates: 0.5*(b_ih+b_hh) fused into the hoisted x-preactivation;
        # n gate: b_ih only; lanes 96:128 carry b_c2 (com2 bias).
        b_x = jnp.concatenate([0.5 * (b_ih[:, :2 * H] + b_hh[:, :2 * H]),
                               b_ih[:, 2 * H:], b_c2], axis=1)                   # (1, 128)
        v = srow(v, r_bx, b_x)
        v = srow(v, r_bhn, 0.5 * b_hh[:, 2 * H:])                # b_hh_n stays inside r*(...)
    v = srow(v, V_G_LN1, p["g_ln1"]); v = srow(v, V_B_LN1, p["b_ln1"])
    v = srow(v, V_G_LN2, p["g_ln2"]); v = srow(v, V_B_LN2, p["b_ln2"])
    v = srow(v, V_G_LN3, p["g_ln3"]); v = srow(v, V_B_LN3, p["b_ln3"])
    v = srow(v, V_B_NN1, p["b_nn1"]); v = srow(v, V_B_NN2, p["b_nn2"])

    assert w_slab.shape == (W_ROWS, LANES) and v.shape == (V_ROWS, LANES)
    return w_slab, v


if __name__ == "__main__":
    key = jax.random.PRNGKey(0)
    kx, km, kmask, kp = jax.random.split(key, 4)

    X = jax.random.normal(kx, (S, B, I_DIM), jnp.float32)
    M = jax.random.normal(km, (S, B, I_DIM), jnp.float32)
    mask = (jax.random.uniform(kmask, (S, B)) > 0.3).astype(jnp.float32)
    w_slab, v_slab = pack_params(make_params(kp))

    out = cnngru_forward(X, M, mask, w_slab, v_slab)
    jax.block_until_ready(out)
    assert out.shape == (S, B, 2)
    print("KERNEL_OK")
</pallas_src>

<mosaic_0001>
module attributes {stable_mosaic.version = 11 : i64} {
  func.func @cnngru_kernel(%arg0: memref<32x48xf32, #tpu.memory_space<vmem>>, %arg1: memref<328x128xbf16, #tpu.memory_space<vmem>>, %arg2: memref<24x128xf32, #tpu.memory_space<vmem>>, %arg3: memref<32x2xf32, #tpu.memory_space<vmem>>) attributes {dimension_semantics = [], scalar_prefetch = 0 : i64, scratch_operands = 0 : i64, tpu.core_type = #tpu.core_type<tc>} {
    %c0 = arith.constant 0 : index
    %c0_0 = arith.constant 0 : index
    %0 = vector.load %arg0[%c0, %c0_0] : memref<32x48xf32, #tpu.memory_space<vmem>>, vector<32x48xf32>
    %c0_1 = arith.constant 0 : index
    %c0_2 = arith.constant 0 : index
    %1 = vector.load %arg1[%c0_1, %c0_2] : memref<328x128xbf16, #tpu.memory_space<vmem>>, vector<48x80xbf16>
    %2 = arith.truncf %0 : vector<32x48xf32> to vector<32x48xbf16>
    %cst = arith.constant dense<0.000000e+00> : vector<32x80xf32>
    %3 = tpu.matmul %2, %1, %cst {dimension_numbers = #tpu.dot_dimension_numbers<[1], [0], [0], [1], [0, 0, 1, 1], [], []>} : vector<32x48xbf16>, vector<48x80xbf16>, vector<32x80xf32> -> vector<32x80xf32>
    %c0_3 = arith.constant 0 : index
    %c0_4 = arith.constant 0 : index
    %4 = vector.load %arg2[%c0_3, %c0_4] : memref<24x128xf32, #tpu.memory_space<vmem>>, vector<1x80xf32>
    %5 = vector.broadcast %4 : vector<1x80xf32> to vector<32x80xf32>
    %6 = arith.addf %3, %5 : vector<32x80xf32>
    %7 = vector.extract_strided_slice %6 {offsets = [0, 0], sizes = [32, 16], strides = [1, 1]} : vector<32x80xf32> to vector<32x16xf32>
    %8 = vector.extract_strided_slice %6 {offsets = [0, 16], sizes = [32, 32], strides = [1, 1]} : vector<32x80xf32> to vector<32x32xf32>
    %9 = vector.extract_strided_slice %6 {offsets = [0, 48], sizes = [4, 32], strides = [1, 1]} : vector<32x80xf32> to vector<4x32xf32>
    %c48 = arith.constant 48 : index
    %c0_5 = arith.constant 0 : index
    %10 = vector.load %arg1[%c48, %c0_5] : memref<328x128xbf16, #tpu.memory_space<vmem>>, vector<16x32xbf16>
    %11 = arith.truncf %7 : vector<32x16xf32> to vector<32x16xbf16>
    %cst_6 = arith.constant dense<0.000000e+00> : vector<32x32xf32>
    %12 = tpu.matmul %11, %10, %cst_6 {dimension_numbers = #tpu.dot_dimension_numbers<[1], [0], [0], [1], [0, 0, 1, 1], [], []>} : vector<32x16xbf16>, vector<16x32xbf16>, vector<32x32xf32> -> vector<32x32xf32>
    %c1 = arith.constant 1 : index
    %c0_7 = arith.constant 0 : index
    %13 = vector.load %arg2[%c1, %c0_7] : memref<24x128xf32, #tpu.memory_space<vmem>>, vector<1x32xf32>
    %14 = vector.broadcast %13 : vector<1x32xf32> to vector<32x32xf32>
    %15 = arith.addf %12, %14 : vector<32x32xf32>
    %c2 = arith.constant 2 : index
    %c0_8 = arith.constant 0 : index
    %16 = vector.load %arg2[%c2, %c0_8] : memref<24x128xf32, #tpu.memory_space<vmem>>, vector<1x32xf32>
    %c3 = arith.constant 3 : index
    %c0_9 = arith.constant 0 : index
    %17 = vector.load %arg2[%c3, %c0_9] : memref<24x128xf32, #tpu.memory_space<vmem>>, vector<1x32xf32>
    %cst_10 = arith.constant dense<0.000000e+00> : vector<32xf32>
    %18 = vector.multi_reduction <add>, %15, %cst_10 [0] : vector<32x32xf32> to vector<32xf32>
    %19 = vector.shape_cast %18 : vector<32xf32> to vector<1x32xf32>
    %cst_11 = arith.constant 3.200000e+01 : f32
    %20 = vector.broadcast %cst_11 : f32 to vector<1x32xf32>
    %21 = arith.divf %19, %20 : vector<1x32xf32>
    %22 = vector.broadcast %21 : vector<1x32xf32> to vector<32x32xf32>
    %23 = arith.subf %15, %22 : vector<32x32xf32>
    %24 = arith.mulf %23, %23 : vector<32x32xf32>
    %cst_12 = arith.constant dense<0.000000e+00> : vector<32xf32>
    %25 = vector.multi_reduction <add>, %24, %cst_12 [0] : vector<32x32xf32> to vector<32xf32>
    %26 = vector.shape_cast %25 : vector<32xf32> to vector<1x32xf32>
    %cst_13 = arith.constant 3.200000e+01 : f32
    %27 = vector.broadcast %cst_13 : f32 to vector<1x32xf32>
    %28 = arith.divf %26, %27 : vector<1x32xf32>
    %29 = vector.broadcast %21 : vector<1x32xf32> to vector<32x32xf32>
    %30 = arith.subf %15, %29 : vector<32x32xf32>
    %cst_14 = arith.constant 9.99999974E-6 : f32
    %31 = vector.broadcast %cst_14 : f32 to vector<1x32xf32>
    %32 = arith.addf %28, %31 : vector<1x32xf32>
    %33 = math.rsqrt %32 : vector<1x32xf32>
    %34 = vector.broadcast %33 : vector<1x32xf32> to vector<32x32xf32>
    %35 = arith.mulf %30, %34 : vector<32x32xf32>
    %36 = vector.broadcast %16 : vector<1x32xf32> to vector<32x32xf32>
    %37 = arith.mulf %35, %36 : vector<32x32xf32>
    %38 = vector.broadcast %17 : vector<1x32xf32> to vector<32x32xf32>
    %39 = arith.addf %37, %38 : vector<32x32xf32>
    %cst_15 = arith.constant 0.000000e+00 : f32
    %40 = vector.broadcast %cst_15 : f32 to vector<32x32xf32>
    %41 = arith.maximumf %39, %40 : vector<32x32xf32>
    %c64 = arith.constant 64 : index
    %c0_16 = arith.constant 0 : index
    %42 = vector.load %arg1[%c64, %c0_16] : memref<328x128xbf16, #tpu.memory_space<vmem>>, vector<32x32xbf16>
    %43 = arith.truncf %41 : vector<32x32xf32> to vector<32x32xbf16>
    %cst_17 = arith.constant dense<0.000000e+00> : vector<32x32xf32>
    %44 = tpu.matmul %43, %42, %cst_17 {dimension_numbers = #tpu.dot_dimension_numbers<[1], [0], [0], [1], [0, 0, 1, 1], [], []>} : vector<32x32xbf16>, vector<32x32xbf16>, vector<32x32xf32> -> vector<32x32xf32>
    %c4 = arith.constant 4 : index
    %c0_18 = arith.constant 0 : index
    %45 = vector.load %arg2[%c4, %c0_18] : memref<24x128xf32, #tpu.memory_space<vmem>>, vector<1x32xf32>
    %46 = vector.broadcast %45 : vector<1x32xf32> to vector<32x32xf32>
    %47 = arith.addf %44, %46 : vector<32x32xf32>
    %c5 = arith.constant 5 : index
    %c0_19 = arith.constant 0 : index
    %48 = vector.load %arg2[%c5, %c0_19] : memref<24x128xf32, #tpu.memory_space<vmem>>, vector<1x32xf32>
    %c6 = arith.constant 6 : index
    %c0_20 = arith.constant 0 : index
    %49 = vector.load %arg2[%c6, %c0_20] : memref<24x128xf32, #tpu.memory_space<vmem>>, vector<1x32xf32>
    %cst_21 = arith.constant dense<0.000000e+00> : vector<32xf32>
    %50 = vector.multi_reduction <add>, %47, %cst_21 [0] : vector<32x32xf32> to vector<32xf32>
    %51 = vector.shape_cast %50 : vector<32xf32> to vector<1x32xf32>
    %cst_22 = arith.constant 3.200000e+01 : f32
    %52 = vector.broadcast %cst_22 : f32 to vector<1x32xf32>
    %53 = arith.divf %51, %52 : vector<1x32xf32>
    %54 = vector.broadcast %53 : vector<1x32xf32> to vector<32x32xf32>
    %55 = arith.subf %47, %54 : vector<32x32xf32>
    %56 = arith.mulf %55, %55 : vector<32x32xf32>
    %cst_23 = arith.constant dense<0.000000e+00> : vector<32xf32>
    %57 = vector.multi_reduction <add>, %56, %cst_23 [0] : vector<32x32xf32> to vector<32xf32>
    %58 = vector.shape_cast %57 : vector<32xf32> to vector<1x32xf32>
    %cst_24 = arith.constant 3.200000e+01 : f32
    %59 = vector.broadcast %cst_24 : f32 to vector<1x32xf32>
    %60 = arith.divf %58, %59 : vector<1x32xf32>
    %61 = vector.broadcast %53 : vector<1x32xf32> to vector<32x32xf32>
    %62 = arith.subf %47, %61 : vector<32x32xf32>
    %cst_25 = arith.constant 9.99999974E-6 : f32
    %63 = vector.broadcast %cst_25 : f32 to vector<1x32xf32>
    %64 = arith.addf %60, %63 : vector<1x32xf32>
    %65 = math.rsqrt %64 : vector<1x32xf32>
    %66 = vector.broadcast %65 : vector<1x32xf32> to vector<32x32xf32>
    %67 = arith.mulf %62, %66 : vector<32x32xf32>
    %68 = vector.broadcast %48 : vector<1x32xf32> to vector<32x32xf32>
    %69 = arith.mulf %67, %68 : vector<32x32xf32>
    %70 = vector.broadcast %49 : vector<1x32xf32> to vector<32x32xf32>
    %71 = arith.addf %69, %70 : vector<32x32xf32>
    %72 = arith.addf %71, %8 : vector<32x32xf32>
    %73 = vector.extract_strided_slice %0 {offsets = [0, 40], sizes = [32, 1], strides = [1, 1]} : vector<32x48xf32> to vector<32x1xf32>
    %cst_26 = arith.constant 5.000000e-01 : f32
    %74 = vector.broadcast %cst_26 : f32 to vector<32x1xf32>
    %75 = arith.mulf %74, %73 : vector<32x1xf32>
    %76 = vector.shape_cast %75 : vector<32x1xf32> to vector<32x1xf32>
    %77 = vector.broadcast %76 : vector<32x1xf32> to vector<32x32xf32>
    %c96 = arith.constant 96 : index
    %c0_27 = arith.constant 0 : index
    %78 = vector.load %arg1[%c96, %c0_27] : memref<328x128xbf16, #tpu.memory_space<vmem>>, vector<32x128xbf16>
    %79 = arith.truncf %72 : vector<32x32xf32> to vector<32x32xbf16>
    %cst_28 = arith.constant dense<0.000000e+00> : vector<32x128xf32>
    %80 = tpu.matmul %79, %78, %cst_28 {dimension_numbers = #tpu.dot_dimension_numbers<[1], [0], [0], [1], [0, 0, 1, 1], [], []>} : vector<32x32xbf16>, vector<32x128xbf16>, vector<32x128xf32> -> vector<32x128xf32>
    %c7 = arith.constant 7 : index
    %c0_29 = arith.constant 0 : index
    %81 = vector.load %arg2[%c7, %c0_29] : memref<24x128xf32, #tpu.memory_space<vmem>>, vector<1x128xf32>
    %82 = vector.broadcast %81 : vector<1x128xf32> to vector<32x128xf32>
    %83 = arith.addf %80, %82 : vector<32x128xf32>
    %c128 = arith.constant 128 : index
    %c0_30 = arith.constant 0 : index
    %84 = vector.load %arg1[%c128, %c0_30] : memref<328x128xbf16, #tpu.memory_space<vmem>>, vector<32x96xbf16>
    %c8 = arith.constant 8 : index
    %c0_31 = arith.constant 0 : index
    %85 = vector.load %arg2[%c8, %c0_31] : memref<24x128xf32, #tpu.memory_space<vmem>>, vector<1x32xf32>
    %86 = vector.shape_cast %85 : vector<1x32xf32> to vector<1x32xf32>
    %87 = vector.broadcast %86 : vector<1x32xf32> to vector<4x32xf32>
    %88 = vector.extract_strided_slice %83 {offsets = [0, 0], sizes = [4, 128], strides = [1, 1]} : vector<32x128xf32> to vector<4x128xf32>
    %89 = arith.truncf %9 : vector<4x32xf32> to vector<4x32xbf16>
    %cst_32 = arith.constant dense<0.000000e+00> : vector<4x96xf32>
    %90 = tpu.matmul %89, %84, %cst_32 {dimension_numbers = #tpu.dot_dimension_numbers<[1], [0], [0], [1], [0, 0, 1, 1], [], []>} : vector<4x32xbf16>, vector<32x96xbf16>, vector<4x96xf32> -> vector<4x96xf32>
    %91 = vector.extract_strided_slice %88 {offsets = [0, 0], sizes = [4, 64], strides = [1, 1]} : vector<4x128xf32> to vector<4x64xf32>
    %92 = vector.extract_strided_slice %90 {offsets = [0, 0], sizes = [4, 64], strides = [1, 1]} : vector<4x96xf32> to vector<4x64xf32>
    %93 = arith.addf %91, %92 : vector<4x64xf32>
    %94 = math.tanh %93 : vector<4x64xf32>
    %95 = vector.extract_strided_slice %90 {offsets = [0, 64], sizes = [4, 32], strides = [1, 1]} : vector<4x96xf32> to vector<4x32xf32>
    %96 = arith.addf %95, %87 : vector<4x32xf32>
    %97 = vector.extract_strided_slice %88 {offsets = [0, 64], sizes = [4, 32], strides = [1, 1]} : vector<4x128xf32> to vector<4x32xf32>
    %98 = vector.extract_strided_slice %94 {offsets = [0, 0], sizes = [4, 32], strides = [1, 1]} : vector<4x64xf32> to vector<4x32xf32>
    %cst_33 = arith.constant 1.000000e+00 : f32
    %99 = vector.broadcast %cst_33 : f32 to vector<4x32xf32>
    %100 = arith.addf %98, %99 : vector<4x32xf32>
    %101 = arith.mulf %100, %96 : vector<4x32xf32>
    %102 = arith.addf %97, %101 : vector<4x32xf32>
    %103 = math.tanh %102 : vector<4x32xf32>
    %104 = vector.extract_strided_slice %77 {offsets = [0, 0], sizes = [4, 32], strides = [1, 1]} : vector<32x32xf32> to vector<4x32xf32>
    %105 = vector.extract_strided_slice %94 {offsets = [0, 32], sizes = [4, 32], strides = [1, 1]} : vector<4x64xf32> to vector<4x32xf32>
    %cst_34 = arith.constant 1.000000e+00 : f32
    %106 = vector.broadcast %cst_34 : f32 to vector<4x32xf32>
    %107 = arith.subf %106, %105 : vector<4x32xf32>
    %108 = arith.mulf %104, %107 : vector<4x32xf32>
    %109 = arith.subf %103, %9 : vector<4x32xf32>
    %110 = arith.mulf %108, %109 : vector<4x32xf32>
    %111 = arith.addf %9, %110 : vector<4x32xf32>
    %112 = vector.extract_strided_slice %83 {offsets = [4, 0], sizes = [4, 128], strides = [1, 1]} : vector<32x128xf32> to vector<4x128xf32>
    %113 = arith.truncf %111 : vector<4x32xf32> to vector<4x32xbf16>
    %cst_35 = arith.constant dense<0.000000e+00> : vector<4x96xf32>
    %114 = tpu.matmul %113, %84, %cst_35 {dimension_numbers = #tpu.dot_dimension_numbers<[1], [0], [0], [1], [0, 0, 1, 1], [], []>} : vector<4x32xbf16>, vector<32x96xbf16>, vector<4x96xf32> -> vector<4x96xf32>
    %115 = vector.extract_strided_slice %112 {offsets = [0, 0], sizes = [4, 64], strides = [1, 1]} : vector<4x128xf32> to vector<4x64xf32>
    %116 = vector.extract_strided_slice %114 {offsets = [0, 0], sizes = [4, 64], strides = [1, 1]} : vector<4x96xf32> to vector<4x64xf32>
    %117 = arith.addf %115, %116 : vector<4x64xf32>
    %118 = math.tanh %117 : vector<4x64xf32>
    %119 = vector.extract_strided_slice %114 {offsets = [0, 64], sizes = [4, 32], strides = [1, 1]} : vector<4x96xf32> to vector<4x32xf32>
    %120 = arith.addf %119, %87 : vector<4x32xf32>
    %121 = vector.extract_strided_slice %112 {offsets = [0, 64], sizes = [4, 32], strides = [1, 1]} : vector<4x128xf32> to vector<4x32xf32>
    %122 = vector.extract_strided_slice %118 {offsets = [0, 0], sizes = [4, 32], strides = [1, 1]} : vector<4x64xf32> to vector<4x32xf32>
    %cst_36 = arith.constant 1.000000e+00 : f32
    %123 = vector.broadcast %cst_36 : f32 to vector<4x32xf32>
    %124 = arith.addf %122, %123 : vector<4x32xf32>
    %125 = arith.mulf %124, %120 : vector<4x32xf32>
    %126 = arith.addf %121, %125 : vector<4x32xf32>
    %127 = math.tanh %126 : vector<4x32xf32>
    %128 = vector.extract_strided_slice %77 {offsets = [4, 0], sizes = [4, 32], strides = [1, 1]} : vector<32x32xf32> to vector<4x32xf32>
    %129 = vector.extract_strided_slice %118 {offsets = [0, 32], sizes = [4, 32], strides = [1, 1]} : vector<4x64xf32> to vector<4x32xf32>
    %cst_37 = arith.constant 1.000000e+00 : f32
    %130 = vector.broadcast %cst_37 : f32 to vector<4x32xf32>
    %131 = arith.subf %130, %129 : vector<4x32xf32>
    %132 = arith.mulf %128, %131 : vector<4x32xf32>
    %133 = arith.subf %127, %111 : vector<4x32xf32>
    %134 = arith.mulf %132, %133 : vector<4x32xf32>
    %135 = arith.addf %111, %134 : vector<4x32xf32>
    %136 = vector.extract_strided_slice %83 {offsets = [8, 0], sizes = [4, 128], strides = [1, 1]} : vector<32x128xf32> to vector<4x128xf32>
    %137 = arith.truncf %135 : vector<4x32xf32> to vector<4x32xbf16>
    %cst_38 = arith.constant dense<0.000000e+00> : vector<4x96xf32>
    %138 = tpu.matmul %137, %84, %cst_38 {dimension_numbers = #tpu.dot_dimension_numbers<[1], [0], [0], [1], [0, 0, 1, 1], [], []>} : vector<4x32xbf16>, vector<32x96xbf16>, vector<4x96xf32> -> vector<4x96xf32>
    %139 = vector.extract_strided_slice %136 {offsets = [0, 0], sizes = [4, 64], strides = [1, 1]} : vector<4x128xf32> to vector<4x64xf32>
    %140 = vector.extract_strided_slice %138 {offsets = [0, 0], sizes = [4, 64], strides = [1, 1]} : vector<4x96xf32> to vector<4x64xf32>
    %141 = arith.addf %139, %140 : vector<4x64xf32>
    %142 = math.tanh %141 : vector<4x64xf32>
    %143 = vector.extract_strided_slice %138 {offsets = [0, 64], sizes = [4, 32], strides = [1, 1]} : vector<4x96xf32> to vector<4x32xf32>
    %144 = arith.addf %143, %87 : vector<4x32xf32>
    %145 = vector.extract_strided_slice %136 {offsets = [0, 64], sizes = [4, 32], strides = [1, 1]} : vector<4x128xf32> to vector<4x32xf32>
    %146 = vector.extract_strided_slice %142 {offsets = [0, 0], sizes = [4, 32], strides = [1, 1]} : vector<4x64xf32> to vector<4x32xf32>
    %cst_39 = arith.constant 1.000000e+00 : f32
    %147 = vector.broadcast %cst_39 : f32 to vector<4x32xf32>
    %148 = arith.addf %146, %147 : vector<4x32xf32>
    %149 = arith.mulf %148, %144 : vector<4x32xf32>
    %150 = arith.addf %145, %149 : vector<4x32xf32>
    %151 = math.tanh %150 : vector<4x32xf32>
    %152 = vector.extract_strided_slice %77 {offsets = [8, 0], sizes = [4, 32], strides = [1, 1]} : vector<32x32xf32> to vector<4x32xf32>
    %153 = vector.extract_strided_slice %142 {offsets = [0, 32], sizes = [4, 32], strides = [1, 1]} : vector<4x64xf32> to vector<4x32xf32>
    %cst_40 = arith.constant 1.000000e+00 : f32
    %154 = vector.broadcast %cst_40 : f32 to vector<4x32xf32>
    %155 = arith.subf %154, %153 : vector<4x32xf32>
    %156 = arith.mulf %152, %155 : vector<4x32xf32>
    %157 = arith.subf %151, %135 : vector<4x32xf32>
    %158 = arith.mulf %156, %157 : vector<4x32xf32>
    %159 = arith.addf %135, %158 : vector<4x32xf32>
    %160 = vector.extract_strided_slice %83 {offsets = [12, 0], sizes = [4, 128], strides = [1, 1]} : vector<32x128xf32> to vector<4x128xf32>
    %161 = arith.truncf %159 : vector<4x32xf32> to vector<4x32xbf16>
    %cst_41 = arith.constant dense<0.000000e+00> : vector<4x96xf32>
    %162 = tpu.matmul %161, %84, %cst_41 {dimension_numbers = #tpu.dot_dimension_numbers<[1], [0], [0], [1], [0, 0, 1, 1], [], []>} : vector<4x32xbf16>, vector<32x96xbf16>, vector<4x96xf32> -> vector<4x96xf32>
    %163 = vector.extract_strided_slice %160 {offsets = [0, 0], sizes = [4, 64], strides = [1, 1]} : vector<4x128xf32> to vector<4x64xf32>
    %164 = vector.extract_strided_slice %162 {offsets = [0, 0], sizes = [4, 64], strides = [1, 1]} : vector<4x96xf32> to vector<4x64xf32>
    %165 = arith.addf %163, %164 : vector<4x64xf32>
    %166 = math.tanh %165 : vector<4x64xf32>
    %167 = vector.extract_strided_slice %162 {offsets = [0, 64], sizes = [4, 32], strides = [1, 1]} : vector<4x96xf32> to vector<4x32xf32>
    %168 = arith.addf %167, %87 : vector<4x32xf32>
    %169 = vector.extract_strided_slice %160 {offsets = [0, 64], sizes = [4, 32], strides = [1, 1]} : vector<4x128xf32> to vector<4x32xf32>
    %170 = vector.extract_strided_slice %166 {offsets = [0, 0], sizes = [4, 32], strides = [1, 1]} : vector<4x64xf32> to vector<4x32xf32>
    %cst_42 = arith.constant 1.000000e+00 : f32
    %171 = vector.broadcast %cst_42 : f32 to vector<4x32xf32>
    %172 = arith.addf %170, %171 : vector<4x32xf32>
    %173 = arith.mulf %172, %168 : vector<4x32xf32>
    %174 = arith.addf %169, %173 : vector<4x32xf32>
    %175 = math.tanh %174 : vector<4x32xf32>
    %176 = vector.extract_strided_slice %77 {offsets = [12, 0], sizes = [4, 32], strides = [1, 1]} : vector<32x32xf32> to vector<4x32xf32>
    %177 = vector.extract_strided_slice %166 {offsets = [0, 32], sizes = [4, 32], strides = [1, 1]} : vector<4x64xf32> to vector<4x32xf32>
    %cst_43 = arith.constant 1.000000e+00 : f32
    %178 = vector.broadcast %cst_43 : f32 to vector<4x32xf32>
    %179 = arith.subf %178, %177 : vector<4x32xf32>
    %180 = arith.mulf %176, %179 : vector<4x32xf32>
    %181 = arith.subf %175, %159 : vector<4x32xf32>
    %182 = arith.mulf %180, %181 : vector<4x32xf32>
    %183 = arith.addf %159, %182 : vector<4x32xf32>
    %184 = vector.extract_strided_slice %83 {offsets = [16, 0], sizes = [4, 128], strides = [1, 1]} : vector<32x128xf32> to vector<4x128xf32>
    %185 = arith.truncf %183 : vector<4x32xf32> to vector<4x32xbf16>
    %cst_44 = arith.constant dense<0.000000e+00> : vector<4x96xf32>
    %186 = tpu.matmul %185, %84, %cst_44 {dimension_numbers = #tpu.dot_dimension_numbers<[1], [0], [0], [1], [0, 0, 1, 1], [], []>} : vector<4x32xbf16>, vector<32x96xbf16>, vector<4x96xf32> -> vector<4x96xf32>
    %187 = vector.extract_strided_slice %184 {offsets = [0, 0], sizes = [4, 64], strides = [1, 1]} : vector<4x128xf32> to vector<4x64xf32>
    %188 = vector.extract_strided_slice %186 {offsets = [0, 0], sizes = [4, 64], strides = [1, 1]} : vector<4x96xf32> to vector<4x64xf32>
    %189 = arith.addf %187, %188 : vector<4x64xf32>
    %190 = math.tanh %189 : vector<4x64xf32>
    %191 = vector.extract_strided_slice %186 {offsets = [0, 64], sizes = [4, 32], strides = [1, 1]} : vector<4x96xf32> to vector<4x32xf32>
    %192 = arith.addf %191, %87 : vector<4x32xf32>
    %193 = vector.extract_strided_slice %184 {offsets = [0, 64], sizes = [4, 32], strides = [1, 1]} : vector<4x128xf32> to vector<4x32xf32>
    %194 = vector.extract_strided_slice %190 {offsets = [0, 0], sizes = [4, 32], strides = [1, 1]} : vector<4x64xf32> to vector<4x32xf32>
    %cst_45 = arith.constant 1.000000e+00 : f32
    %195 = vector.broadcast %cst_45 : f32 to vector<4x32xf32>
    %196 = arith.addf %194, %195 : vector<4x32xf32>
    %197 = arith.mulf %196, %192 : vector<4x32xf32>
    %198 = arith.addf %193, %197 : vector<4x32xf32>
    %199 = math.tanh %198 : vector<4x32xf32>
    %200 = vector.extract_strided_slice %77 {offsets = [16, 0], sizes = [4, 32], strides = [1, 1]} : vector<32x32xf32> to vector<4x32xf32>
    %201 = vector.extract_strided_slice %190 {offsets = [0, 32], sizes = [4, 32], strides = [1, 1]} : vector<4x64xf32> to vector<4x32xf32>
    %cst_46 = arith.constant 1.000000e+00 : f32
    %202 = vector.broadcast %cst_46 : f32 to vector<4x32xf32>
    %203 = arith.subf %202, %201 : vector<4x32xf32>
    %204 = arith.mulf %200, %203 : vector<4x32xf32>
    %205 = arith.subf %199, %183 : vector<4x32xf32>
    %206 = arith.mulf %204, %205 : vector<4x32xf32>
    %207 = arith.addf %183, %206 : vector<4x32xf32>
    %208 = vector.extract_strided_slice %83 {offsets = [20, 0], sizes = [4, 128], strides = [1, 1]} : vector<32x128xf32> to vector<4x128xf32>
    %209 = arith.truncf %207 : vector<4x32xf32> to vector<4x32xbf16>
    %cst_47 = arith.constant dense<0.000000e+00> : vector<4x96xf32>
    %210 = tpu.matmul %209, %84, %cst_47 {dimension_numbers = #tpu.dot_dimension_numbers<[1], [0], [0], [1], [0, 0, 1, 1], [], []>} : vector<4x32xbf16>, vector<32x96xbf16>, vector<4x96xf32> -> vector<4x96xf32>
    %211 = vector.extract_strided_slice %208 {offsets = [0, 0], sizes = [4, 64], strides = [1, 1]} : vector<4x128xf32> to vector<4x64xf32>
    %212 = vector.extract_strided_slice %210 {offsets = [0, 0], sizes = [4, 64], strides = [1, 1]} : vector<4x96xf32> to vector<4x64xf32>
    %213 = arith.addf %211, %212 : vector<4x64xf32>
    %214 = math.tanh %213 : vector<4x64xf32>
    %215 = vector.extract_strided_slice %210 {offsets = [0, 64], sizes = [4, 32], strides = [1, 1]} : vector<4x96xf32> to vector<4x32xf32>
    %216 = arith.addf %215, %87 : vector<4x32xf32>
    %217 = vector.extract_strided_slice %208 {offsets = [0, 64], sizes = [4, 32], strides = [1, 1]} : vector<4x128xf32> to vector<4x32xf32>
    %218 = vector.extract_strided_slice %214 {offsets = [0, 0], sizes = [4, 32], strides = [1, 1]} : vector<4x64xf32> to vector<4x32xf32>
    %cst_48 = arith.constant 1.000000e+00 : f32
    %219 = vector.broadcast %cst_48 : f32 to vector<4x32xf32>
    %220 = arith.addf %218, %219 : vector<4x32xf32>
    %221 = arith.mulf %220, %216 : vector<4x32xf32>
    %222 = arith.addf %217, %221 : vector<4x32xf32>
    %223 = math.tanh %222 : vector<4x32xf32>
    %224 = vector.extract_strided_slice %77 {offsets = [20, 0], sizes = [4, 32], strides = [1, 1]} : vector<32x32xf32> to vector<4x32xf32>
    %225 = vector.extract_strided_slice %214 {offsets = [0, 32], sizes = [4, 32], strides = [1, 1]} : vector<4x64xf32> to vector<4x32xf32>
    %cst_49 = arith.constant 1.000000e+00 : f32
    %226 = vector.broadcast %cst_49 : f32 to vector<4x32xf32>
    %227 = arith.subf %226, %225 : vector<4x32xf32>
    %228 = arith.mulf %224, %227 : vector<4x32xf32>
    %229 = arith.subf %223, %207 : vector<4x32xf32>
    %230 = arith.mulf %228, %229 : vector<4x32xf32>
    %231 = arith.addf %207, %230 : vector<4x32xf32>
    %232 = vector.extract_strided_slice %83 {offsets = [24, 0], sizes = [4, 128], strides = [1, 1]} : vector<32x128xf32> to vector<4x128xf32>
    %233 = arith.truncf %231 : vector<4x32xf32> to vector<4x32xbf16>
    %cst_50 = arith.constant dense<0.000000e+00> : vector<4x96xf32>
    %234 = tpu.matmul %233, %84, %cst_50 {dimension_numbers = #tpu.dot_dimension_numbers<[1], [0], [0], [1], [0, 0, 1, 1], [], []>} : vector<4x32xbf16>, vector<32x96xbf16>, vector<4x96xf32> -> vector<4x96xf32>
    %235 = vector.extract_strided_slice %232 {offsets = [0, 0], sizes = [4, 64], strides = [1, 1]} : vector<4x128xf32> to vector<4x64xf32>
    %236 = vector.extract_strided_slice %234 {offsets = [0, 0], sizes = [4, 64], strides = [1, 1]} : vector<4x96xf32> to vector<4x64xf32>
    %237 = arith.addf %235, %236 : vector<4x64xf32>
    %238 = math.tanh %237 : vector<4x64xf32>
    %239 = vector.extract_strided_slice %234 {offsets = [0, 64], sizes = [4, 32], strides = [1, 1]} : vector<4x96xf32> to vector<4x32xf32>
    %240 = arith.addf %239, %87 : vector<4x32xf32>
    %241 = vector.extract_strided_slice %232 {offsets = [0, 64], sizes = [4, 32], strides = [1, 1]} : vector<4x128xf32> to vector<4x32xf32>
    %242 = vector.extract_strided_slice %238 {offsets = [0, 0], sizes = [4, 32], strides = [1, 1]} : vector<4x64xf32> to vector<4x32xf32>
    %cst_51 = arith.constant 1.000000e+00 : f32
    %243 = vector.broadcast %cst_51 : f32 to vector<4x32xf32>
    %244 = arith.addf %242, %243 : vector<4x32xf32>
    %245 = arith.mulf %244, %240 : vector<4x32xf32>
    %246 = arith.addf %241, %245 : vector<4x32xf32>
    %247 = math.tanh %246 : vector<4x32xf32>
    %248 = vector.extract_strided_slice %77 {offsets = [24, 0], sizes = [4, 32], strides = [1, 1]} : vector<32x32xf32> to vector<4x32xf32>
    %249 = vector.extract_strided_slice %238 {offsets = [0, 32], sizes = [4, 32], strides = [1, 1]} : vector<4x64xf32> to vector<4x32xf32>
    %cst_52 = arith.constant 1.000000e+00 : f32
    %250 = vector.broadcast %cst_52 : f32 to vector<4x32xf32>
    %251 = arith.subf %250, %249 : vector<4x32xf32>
    %252 = arith.mulf %248, %251 : vector<4x32xf32>
    %253 = arith.subf %247, %231 : vector<4x32xf32>
    %254 = arith.mulf %252, %253 : vector<4x32xf32>
    %255 = arith.addf %231, %254 : vector<4x32xf32>
    %256 = vector.extract_strided_slice %83 {offsets = [28, 0], sizes = [4, 128], strides = [1, 1]} : vector<32x128xf32> to vector<4x128xf32>
    %257 = arith.truncf %255 : vector<4x32xf32> to vector<4x32xbf16>
    %cst_53 = arith.constant dense<0.000000e+00> : vector<4x96xf32>
    %258 = tpu.matmul %257, %84, %cst_53 {dimension_numbers = #tpu.dot_dimension_numbers<[1], [0], [0], [1], [0, 0, 1, 1], [], []>} : vector<4x32xbf16>, vector<32x96xbf16>, vector<4x96xf32> -> vector<4x96xf32>
    %259 = vector.extract_strided_slice %256 {offsets = [0, 0], sizes = [4, 64], strides = [1, 1]} : vector<4x128xf32> to vector<4x64xf32>
    %260 = vector.extract_strided_slice %258 {offsets = [0, 0], sizes = [4, 64], strides = [1, 1]} : vector<4x96xf32> to vector<4x64xf32>
    %261 = arith.addf %259, %260 : vector<4x64xf32>
    %262 = math.tanh %261 : vector<4x64xf32>
    %263 = vector.extract_strided_slice %258 {offsets = [0, 64], sizes = [4, 32], strides = [1, 1]} : vector<4x96xf32> to vector<4x32xf32>
    %264 = arith.addf %263, %87 : vector<4x32xf32>
    %265 = vector.extract_strided_slice %256 {offsets = [0, 64], sizes = [4, 32], strides = [1, 1]} : vector<4x128xf32> to vector<4x32xf32>
    %266 = vector.extract_strided_slice %262 {offsets = [0, 0], sizes = [4, 32], strides = [1, 1]} : vector<4x64xf32> to vector<4x32xf32>
    %cst_54 = arith.constant 1.000000e+00 : f32
    %267 = vector.broadcast %cst_54 : f32 to vector<4x32xf32>
    %268 = arith.addf %266, %267 : vector<4x32xf32>
    %269 = arith.mulf %268, %264 : vector<4x32xf32>
    %270 = arith.addf %265, %269 : vector<4x32xf32>
    %271 = math.tanh %270 : vector<4x32xf32>
    %272 = vector.extract_strided_slice %77 {offsets = [28, 0], sizes = [4, 32], strides = [1, 1]} : vector<32x32xf32> to vector<4x32xf32>
    %273 = vector.extract_strided_slice %262 {offsets = [0, 32], sizes = [4, 32], strides = [1, 1]} : vector<4x64xf32> to vector<4x32xf32>
    %cst_55 = arith.constant 1.000000e+00 : f32
    %274 = vector.broadcast %cst_55 : f32 to vector<4x32xf32>
    %275 = arith.subf %274, %273 : vector<4x32xf32>
    %276 = arith.mulf %272, %275 : vector<4x32xf32>
    %277 = arith.subf %271, %255 : vector<4x32xf32>
    %278 = arith.mulf %276, %277 : vector<4x32xf32>
    %279 = arith.addf %255, %278 : vector<4x32xf32>
    %280 = tpu.concatenate %111, %135, %159, %183, %207, %231, %255, %279 in 0 : vector<4x32xf32>, vector<4x32xf32>, vector<4x32xf32>, vector<4x32xf32>, vector<4x32xf32>, vector<4x32xf32>, vector<4x32xf32>, vector<4x32xf32> -> vector<32x32xf32>
    %281 = vector.extract_strided_slice %83 {offsets = [0, 96], sizes = [32, 32], strides = [1, 1]} : vector<32x128xf32> to vector<32x32xf32>
    %c160 = arith.constant 160 : index
    %c0_56 = arith.constant 0 : index
    %282 = vector.load %arg1[%c160, %c0_56] : memref<328x128xbf16, #tpu.memory_space<vmem>>, vector<32x32xbf16>
    %283 = arith.truncf %280 : vector<32x32xf32> to vector<32x32xbf16>
    %cst_57 = arith.constant dense<0.000000e+00> : vector<32x32xf32>
    %284 = tpu.matmul %283, %282, %cst_57 {dimension_numbers = #tpu.dot_dimension_numbers<[1], [0], [0], [1], [0, 0, 1, 1], [], []>} : vector<32x32xbf16>, vector<32x32xbf16>, vector<32x32xf32> -> vector<32x32xf32>
    %285 = arith.addf %281, %284 : vector<32x32xf32>
    %c11 = arith.constant 11 : index
    %c0_58 = arith.constant 0 : index
    %286 = vector.load %arg2[%c11, %c0_58] : memref<24x128xf32, #tpu.memory_space<vmem>>, vector<1x32xf32>
    %c12 = arith.constant 12 : index
    %c0_59 = arith.constant 0 : index
    %287 = vector.load %arg2[%c12, %c0_59] : memref<24x128xf32, #tpu.memory_space<vmem>>, vector<1x32xf32>
    %cst_60 = arith.constant dense<0.000000e+00> : vector<32xf32>
    %288 = vector.multi_reduction <add>, %285, %cst_60 [1] : vector<32x32xf32> to vector<32xf32>
    %289 = vector.shape_cast %288 : vector<32xf32> to vector<32x1xf32>
    %cst_61 = arith.constant 3.200000e+01 : f32
    %290 = vector.broadcast %cst_61 : f32 to vector<32x1xf32>
    %291 = arith.divf %289, %290 : vector<32x1xf32>
    %292 = vector.broadcast %291 : vector<32x1xf32> to vector<32x32xf32>
    %293 = arith.subf %285, %292 : vector<32x32xf32>
    %294 = arith.mulf %293, %293 : vector<32x32xf32>
    %cst_62 = arith.constant dense<0.000000e+00> : vector<32xf32>
    %295 = vector.multi_reduction <add>, %294, %cst_62 [1] : vector<32x32xf32> to vector<32xf32>
    %296 = vector.shape_cast %295 : vector<32xf32> to vector<32x1xf32>
    %cst_63 = arith.constant 3.200000e+01 : f32
    %297 = vector.broadcast %cst_63 : f32 to vector<32x1xf32>
    %298 = arith.divf %296, %297 : vector<32x1xf32>
    %299 = vector.broadcast %291 : vector<32x1xf32> to vector<32x32xf32>
    %300 = arith.subf %285, %299 : vector<32x32xf32>
    %cst_64 = arith.constant 9.99999974E-6 : f32
    %301 = vector.broadcast %cst_64 : f32 to vector<32x1xf32>
    %302 = arith.addf %298, %301 : vector<32x1xf32>
    %303 = math.rsqrt %302 : vector<32x1xf32>
    %304 = vector.broadcast %303 : vector<32x1xf32> to vector<32x32xf32>
    %305 = arith.mulf %300, %304 : vector<32x32xf32>
    %306 = vector.broadcast %286 : vector<1x32xf32> to vector<32x32xf32>
    %307 = arith.mulf %305, %306 : vector<32x32xf32>
    %308 = vector.broadcast %287 : vector<1x32xf32> to vector<32x32xf32>
    %309 = arith.addf %307, %308 : vector<32x32xf32>
    %c192 = arith.constant 192 : index
    %c0_65 = arith.constant 0 : index
    %310 = vector.load %arg1[%c192, %c0_65] : memref<328x128xbf16, #tpu.memory_space<vmem>>, vector<32x128xbf16>
    %311 = arith.truncf %309 : vector<32x32xf32> to vector<32x32xbf16>
    %cst_66 = arith.constant dense<0.000000e+00> : vector<32x128xf32>
    %312 = tpu.matmul %311, %310, %cst_66 {dimension_numbers = #tpu.dot_dimension_numbers<[1], [0], [0], [1], [0, 0, 1, 1], [], []>} : vector<32x32xbf16>, vector<32x128xbf16>, vector<32x128xf32> -> vector<32x128xf32>
    %c9 = arith.constant 9 : index
    %c0_67 = arith.constant 0 : index
    %313 = vector.load %arg2[%c9, %c0_67] : memref<24x128xf32, #tpu.memory_space<vmem>>, vector<1x128xf32>
    %314 = vector.broadcast %313 : vector<1x128xf32> to vector<32x128xf32>
    %315 = arith.addf %312, %314 : vector<32x128xf32>
    %c224 = arith.constant 224 : index
    %c0_68 = arith.constant 0 : index
    %316 = vector.load %arg1[%c224, %c0_68] : memref<328x128xbf16, #tpu.memory_space<vmem>>, vector<32x96xbf16>
    %c10 = arith.constant 10 : index
    %c0_69 = arith.constant 0 : index
    %317 = vector.load %arg2[%c10, %c0_69] : memref<24x128xf32, #tpu.memory_space<vmem>>, vector<1x32xf32>
    %318 = vector.shape_cast %317 : vector<1x32xf32> to vector<1x32xf32>
    %319 = vector.broadcast %318 : vector<1x32xf32> to vector<4x32xf32>
    %320 = vector.extract_strided_slice %315 {offsets = [0, 0], sizes = [4, 128], strides = [1, 1]} : vector<32x128xf32> to vector<4x128xf32>
    %321 = arith.truncf %9 : vector<4x32xf32> to vector<4x32xbf16>
    %cst_70 = arith.constant dense<0.000000e+00> : vector<4x96xf32>
    %322 = tpu.matmul %321, %316, %cst_70 {dimension_numbers = #tpu.dot_dimension_numbers<[1], [0], [0], [1], [0, 0, 1, 1], [], []>} : vector<4x32xbf16>, vector<32x96xbf16>, vector<4x96xf32> -> vector<4x96xf32>
    %323 = vector.extract_strided_slice %320 {offsets = [0, 0], sizes = [4, 64], strides = [1, 1]} : vector<4x128xf32> to vector<4x64xf32>
    %324 = vector.extract_strided_slice %322 {offsets = [0, 0], sizes = [4, 64], strides = [1, 1]} : vector<4x96xf32> to vector<4x64xf32>
    %325 = arith.addf %323, %324 : vector<4x64xf32>
    %326 = math.tanh %325 : vector<4x64xf32>
    %327 = vector.extract_strided_slice %322 {offsets = [0, 64], sizes = [4, 32], strides = [1, 1]} : vector<4x96xf32> to vector<4x32xf32>
    %328 = arith.addf %327, %319 : vector<4x32xf32>
    %329 = vector.extract_strided_slice %320 {offsets = [0, 64], sizes = [4, 32], strides = [1, 1]} : vector<4x128xf32> to vector<4x32xf32>
    %330 = vector.extract_strided_slice %326 {offsets = [0, 0], sizes = [4, 32], strides = [1, 1]} : vector<4x64xf32> to vector<4x32xf32>
    %cst_71 = arith.constant 1.000000e+00 : f32
    %331 = vector.broadcast %cst_71 : f32 to vector<4x32xf32>
    %332 = arith.addf %330, %331 : vector<4x32xf32>
    %333 = arith.mulf %332, %328 : vector<4x32xf32>
    %334 = arith.addf %329, %333 : vector<4x32xf32>
    %335 = math.tanh %334 : vector<4x32xf32>
    %336 = vector.extract_strided_slice %77 {offsets = [0, 0], sizes = [4, 32], strides = [1, 1]} : vector<32x32xf32> to vector<4x32xf32>
    %337 = vector.extract_strided_slice %326 {offsets = [0, 32], sizes = [4, 32], strides = [1, 1]} : vector<4x64xf32> to vector<4x32xf32>
    %cst_72 = arith.constant 1.000000e+00 : f32
    %338 = vector.broadcast %cst_72 : f32 to vector<4x32xf32>
    %339 = arith.subf %338, %337 : vector<4x32xf32>
    %340 = arith.mulf %336, %339 : vector<4x32xf32>
    %341 = arith.subf %335, %9 : vector<4x32xf32>
    %342 = arith.mulf %340, %341 : vector<4x32xf32>
    %343 = arith.addf %9, %342 : vector<4x32xf32>
    %344 = vector.extract_strided_slice %315 {offsets = [4, 0], sizes = [4, 128], strides = [1, 1]} : vector<32x128xf32> to vector<4x128xf32>
    %345 = arith.truncf %343 : vector<4x32xf32> to vector<4x32xbf16>
    %cst_73 = arith.constant dense<0.000000e+00> : vector<4x96xf32>
    %346 = tpu.matmul %345, %316, %cst_73 {dimension_numbers = #tpu.dot_dimension_numbers<[1], [0], [0], [1], [0, 0, 1, 1], [], []>} : vector<4x32xbf16>, vector<32x96xbf16>, vector<4x96xf32> -> vector<4x96xf32>
    %347 = vector.extract_strided_slice %344 {offsets = [0, 0], sizes = [4, 64], strides = [1, 1]} : vector<4x128xf32> to vector<4x64xf32>
    %348 = vector.extract_strided_slice %346 {offsets = [0, 0], sizes = [4, 64], strides = [1, 1]} : vector<4x96xf32> to vector<4x64xf32>
    %349 = arith.addf %347, %348 : vector<4x64xf32>
    %350 = math.tanh %349 : vector<4x64xf32>
    %351 = vector.extract_strided_slice %346 {offsets = [0, 64], sizes = [4, 32], strides = [1, 1]} : vector<4x96xf32> to vector<4x32xf32>
    %352 = arith.addf %351, %319 : vector<4x32xf32>
    %353 = vector.extract_strided_slice %344 {offsets = [0, 64], sizes = [4, 32], strides = [1, 1]} : vector<4x128xf32> to vector<4x32xf32>
    %354 = vector.extract_strided_slice %350 {offsets = [0, 0], sizes = [4, 32], strides = [1, 1]} : vector<4x64xf32> to vector<4x32xf32>
    %cst_74 = arith.constant 1.000000e+00 : f32
    %355 = vector.broadcast %cst_74 : f32 to vector<4x32xf32>
    %356 = arith.addf %354, %355 : vector<4x32xf32>
    %357 = arith.mulf %356, %352 : vector<4x32xf32>
    %358 = arith.addf %353, %357 : vector<4x32xf32>
    %359 = math.tanh %358 : vector<4x32xf32>
    %360 = vector.extract_strided_slice %77 {offsets = [4, 0], sizes = [4, 32], strides = [1, 1]} : vector<32x32xf32> to vector<4x32xf32>
    %361 = vector.extract_strided_slice %350 {offsets = [0, 32], sizes = [4, 32], strides = [1, 1]} : vector<4x64xf32> to vector<4x32xf32>
    %cst_75 = arith.constant 1.000000e+00 : f32
    %362 = vector.broadcast %cst_75 : f32 to vector<4x32xf32>
    %363 = arith.subf %362, %361 : vector<4x32xf32>
    %364 = arith.mulf %360, %363 : vector<4x32xf32>
    %365 = arith.subf %359, %343 : vector<4x32xf32>
    %366 = arith.mulf %364, %365 : vector<4x32xf32>
    %367 = arith.addf %343, %366 : vector<4x32xf32>
    %368 = vector.extract_strided_slice %315 {offsets = [8, 0], sizes = [4, 128], strides = [1, 1]} : vector<32x128xf32> to vector<4x128xf32>
    %369 = arith.truncf %367 : vector<4x32xf32> to vector<4x32xbf16>
    %cst_76 = arith.constant dense<0.000000e+00> : vector<4x96xf32>
    %370 = tpu.matmul %369, %316, %cst_76 {dimension_numbers = #tpu.dot_dimension_numbers<[1], [0], [0], [1], [0, 0, 1, 1], [], []>} : vector<4x32xbf16>, vector<32x96xbf16>, vector<4x96xf32> -> vector<4x96xf32>
    %371 = vector.extract_strided_slice %368 {offsets = [0, 0], sizes = [4, 64], strides = [1, 1]} : vector<4x128xf32> to vector<4x64xf32>
    %372 = vector.extract_strided_slice %370 {offsets = [0, 0], sizes = [4, 64], strides = [1, 1]} : vector<4x96xf32> to vector<4x64xf32>
    %373 = arith.addf %371, %372 : vector<4x64xf32>
    %374 = math.tanh %373 : vector<4x64xf32>
    %375 = vector.extract_strided_slice %370 {offsets = [0, 64], sizes = [4, 32], strides = [1, 1]} : vector<4x96xf32> to vector<4x32xf32>
    %376 = arith.addf %375, %319 : vector<4x32xf32>
    %377 = vector.extract_strided_slice %368 {offsets = [0, 64], sizes = [4, 32], strides = [1, 1]} : vector<4x128xf32> to vector<4x32xf32>
    %378 = vector.extract_strided_slice %374 {offsets = [0, 0], sizes = [4, 32], strides = [1, 1]} : vector<4x64xf32> to vector<4x32xf32>
    %cst_77 = arith.constant 1.000000e+00 : f32
    %379 = vector.broadcast %cst_77 : f32 to vector<4x32xf32>
    %380 = arith.addf %378, %379 : vector<4x32xf32>
    %381 = arith.mulf %380, %376 : vector<4x32xf32>
    %382 = arith.addf %377, %381 : vector<4x32xf32>
    %383 = math.tanh %382 : vector<4x32xf32>
    %384 = vector.extract_strided_slice %77 {offsets = [8, 0], sizes = [4, 32], strides = [1, 1]} : vector<32x32xf32> to vector<4x32xf32>
    %385 = vector.extract_strided_slice %374 {offsets = [0, 32], sizes = [4, 32], strides = [1, 1]} : vector<4x64xf32> to vector<4x32xf32>
    %cst_78 = arith.constant 1.000000e+00 : f32
    %386 = vector.broadcast %cst_78 : f32 to vector<4x32xf32>
    %387 = arith.subf %386, %385 : vector<4x32xf32>
    %388 = arith.mulf %384, %387 : vector<4x32xf32>
    %389 = arith.subf %383, %367 : vector<4x32xf32>
    %390 = arith.mulf %388, %389 : vector<4x32xf32>
    %391 = arith.addf %367, %390 : vector<4x32xf32>
    %392 = vector.extract_strided_slice %315 {offsets = [12, 0], sizes = [4, 128], strides = [1, 1]} : vector<32x128xf32> to vector<4x128xf32>
    %393 = arith.truncf %391 : vector<4x32xf32> to vector<4x32xbf16>
    %cst_79 = arith.constant dense<0.000000e+00> : vector<4x96xf32>
    %394 = tpu.matmul %393, %316, %cst_79 {dimension_numbers = #tpu.dot_dimension_numbers<[1], [0], [0], [1], [0, 0, 1, 1], [], []>} : vector<4x32xbf16>, vector<32x96xbf16>, vector<4x96xf32> -> vector<4x96xf32>
    %395 = vector.extract_strided_slice %392 {offsets = [0, 0], sizes = [4, 64], strides = [1, 1]} : vector<4x128xf32> to vector<4x64xf32>
    %396 = vector.extract_strided_slice %394 {offsets = [0, 0], sizes = [4, 64], strides = [1, 1]} : vector<4x96xf32> to vector<4x64xf32>
    %397 = arith.addf %395, %396 : vector<4x64xf32>
    %398 = math.tanh %397 : vector<4x64xf32>
    %399 = vector.extract_strided_slice %394 {offsets = [0, 64], sizes = [4, 32], strides = [1, 1]} : vector<4x96xf32> to vector<4x32xf32>
    %400 = arith.addf %399, %319 : vector<4x32xf32>
    %401 = vector.extract_strided_slice %392 {offsets = [0, 64], sizes = [4, 32], strides = [1, 1]} : vector<4x128xf32> to vector<4x32xf32>
    %402 = vector.extract_strided_slice %398 {offsets = [0, 0], sizes = [4, 32], strides = [1, 1]} : vector<4x64xf32> to vector<4x32xf32>
    %cst_80 = arith.constant 1.000000e+00 : f32
    %403 = vector.broadcast %cst_80 : f32 to vector<4x32xf32>
    %404 = arith.addf %402, %403 : vector<4x32xf32>
    %405 = arith.mulf %404, %400 : vector<4x32xf32>
    %406 = arith.addf %401, %405 : vector<4x32xf32>
    %407 = math.tanh %406 : vector<4x32xf32>
    %408 = vector.extract_strided_slice %77 {offsets = [12, 0], sizes = [4, 32], strides = [1, 1]} : vector<32x32xf32> to vector<4x32xf32>
    %409 = vector.extract_strided_slice %398 {offsets = [0, 32], sizes = [4, 32], strides = [1, 1]} : vector<4x64xf32> to vector<4x32xf32>
    %cst_81 = arith.constant 1.000000e+00 : f32
    %410 = vector.broadcast %cst_81 : f32 to vector<4x32xf32>
    %411 = arith.subf %410, %409 : vector<4x32xf32>
    %412 = arith.mulf %408, %411 : vector<4x32xf32>
    %413 = arith.subf %407, %391 : vector<4x32xf32>
    %414 = arith.mulf %412, %413 : vector<4x32xf32>
    %415 = arith.addf %391, %414 : vector<4x32xf32>
    %416 = vector.extract_strided_slice %315 {offsets = [16, 0], sizes = [4, 128], strides = [1, 1]} : vector<32x128xf32> to vector<4x128xf32>
    %417 = arith.truncf %415 : vector<4x32xf32> to vector<4x32xbf16>
    %cst_82 = arith.constant dense<0.000000e+00> : vector<4x96xf32>
    %418 = tpu.matmul %417, %316, %cst_82 {dimension_numbers = #tpu.dot_dimension_numbers<[1], [0], [0], [1], [0, 0, 1, 1], [], []>} : vector<4x32xbf16>, vector<32x96xbf16>, vector<4x96xf32> -> vector<4x96xf32>
    %419 = vector.extract_strided_slice %416 {offsets = [0, 0], sizes = [4, 64], strides = [1, 1]} : vector<4x128xf32> to vector<4x64xf32>
    %420 = vector.extract_strided_slice %418 {offsets = [0, 0], sizes = [4, 64], strides = [1, 1]} : vector<4x96xf32> to vector<4x64xf32>
    %421 = arith.addf %419, %420 : vector<4x64xf32>
    %422 = math.tanh %421 : vector<4x64xf32>
    %423 = vector.extract_strided_slice %418 {offsets = [0, 64], sizes = [4, 32], strides = [1, 1]} : vector<4x96xf32> to vector<4x32xf32>
    %424 = arith.addf %423, %319 : vector<4x32xf32>
    %425 = vector.extract_strided_slice %416 {offsets = [0, 64], sizes = [4, 32], strides = [1, 1]} : vector<4x128xf32> to vector<4x32xf32>
    %426 = vector.extract_strided_slice %422 {offsets = [0, 0], sizes = [4, 32], strides = [1, 1]} : vector<4x64xf32> to vector<4x32xf32>
    %cst_83 = arith.constant 1.000000e+00 : f32
    %427 = vector.broadcast %cst_83 : f32 to vector<4x32xf32>
    %428 = arith.addf %426, %427 : vector<4x32xf32>
    %429 = arith.mulf %428, %424 : vector<4x32xf32>
    %430 = arith.addf %425, %429 : vector<4x32xf32>
    %431 = math.tanh %430 : vector<4x32xf32>
    %432 = vector.extract_strided_slice %77 {offsets = [16, 0], sizes = [4, 32], strides = [1, 1]} : vector<32x32xf32> to vector<4x32xf32>
    %433 = vector.extract_strided_slice %422 {offsets = [0, 32], sizes = [4, 32], strides = [1, 1]} : vector<4x64xf32> to vector<4x32xf32>
    %cst_84 = arith.constant 1.000000e+00 : f32
    %434 = vector.broadcast %cst_84 : f32 to vector<4x32xf32>
    %435 = arith.subf %434, %433 : vector<4x32xf32>
    %436 = arith.mulf %432, %435 : vector<4x32xf32>
    %437 = arith.subf %431, %415 : vector<4x32xf32>
    %438 = arith.mulf %436, %437 : vector<4x32xf32>
    %439 = arith.addf %415, %438 : vector<4x32xf32>
    %440 = vector.extract_strided_slice %315 {offsets = [20, 0], sizes = [4, 128], strides = [1, 1]} : vector<32x128xf32> to vector<4x128xf32>
    %441 = arith.truncf %439 : vector<4x32xf32> to vector<4x32xbf16>
    %cst_85 = arith.constant dense<0.000000e+00> : vector<4x96xf32>
    %442 = tpu.matmul %441, %316, %cst_85 {dimension_numbers = #tpu.dot_dimension_numbers<[1], [0], [0], [1], [0, 0, 1, 1], [], []>} : vector<4x32xbf16>, vector<32x96xbf16>, vector<4x96xf32> -> vector<4x96xf32>
    %443 = vector.extract_strided_slice %440 {offsets = [0, 0], sizes = [4, 64], strides = [1, 1]} : vector<4x128xf32> to vector<4x64xf32>
    %444 = vector.extract_strided_slice %442 {offsets = [0, 0], sizes = [4, 64], strides = [1, 1]} : vector<4x96xf32> to vector<4x64xf32>
    %445 = arith.addf %443, %444 : vector<4x64xf32>
    %446 = math.tanh %445 : vector<4x64xf32>
    %447 = vector.extract_strided_slice %442 {offsets = [0, 64], sizes = [4, 32], strides = [1, 1]} : vector<4x96xf32> to vector<4x32xf32>
    %448 = arith.addf %447, %319 : vector<4x32xf32>
    %449 = vector.extract_strided_slice %440 {offsets = [0, 64], sizes = [4, 32], strides = [1, 1]} : vector<4x128xf32> to vector<4x32xf32>
    %450 = vector.extract_strided_slice %446 {offsets = [0, 0], sizes = [4, 32], strides = [1, 1]} : vector<4x64xf32> to vector<4x32xf32>
    %cst_86 = arith.constant 1.000000e+00 : f32
    %451 = vector.broadcast %cst_86 : f32 to vector<4x32xf32>
    %452 = arith.addf %450, %451 : vector<4x32xf32>
    %453 = arith.mulf %452, %448 : vector<4x32xf32>
    %454 = arith.addf %449, %453 : vector<4x32xf32>
    %455 = math.tanh %454 : vector<4x32xf32>
    %456 = vector.extract_strided_slice %77 {offsets = [20, 0], sizes = [4, 32], strides = [1, 1]} : vector<32x32xf32> to vector<4x32xf32>
    %457 = vector.extract_strided_slice %446 {offsets = [0, 32], sizes = [4, 32], strides = [1, 1]} : vector<4x64xf32> to vector<4x32xf32>
    %cst_87 = arith.constant 1.000000e+00 : f32
    %458 = vector.broadcast %cst_87 : f32 to vector<4x32xf32>
    %459 = arith.subf %458, %457 : vector<4x32xf32>
    %460 = arith.mulf %456, %459 : vector<4x32xf32>
    %461 = arith.subf %455, %439 : vector<4x32xf32>
    %462 = arith.mulf %460, %461 : vector<4x32xf32>
    %463 = arith.addf %439, %462 : vector<4x32xf32>
    %464 = vector.extract_strided_slice %315 {offsets = [24, 0], sizes = [4, 128], strides = [1, 1]} : vector<32x128xf32> to vector<4x128xf32>
    %465 = arith.truncf %463 : vector<4x32xf32> to vector<4x32xbf16>
    %cst_88 = arith.constant dense<0.000000e+00> : vector<4x96xf32>
    %466 = tpu.matmul %465, %316, %cst_88 {dimension_numbers = #tpu.dot_dimension_numbers<[1], [0], [0], [1], [0, 0, 1, 1], [], []>} : vector<4x32xbf16>, vector<32x96xbf16>, vector<4x96xf32> -> vector<4x96xf32>
    %467 = vector.extract_strided_slice %464 {offsets = [0, 0], sizes = [4, 64], strides = [1, 1]} : vector<4x128xf32> to vector<4x64xf32>
    %468 = vector.extract_strided_slice %466 {offsets = [0, 0], sizes = [4, 64], strides = [1, 1]} : vector<4x96xf32> to vector<4x64xf32>
    %469 = arith.addf %467, %468 : vector<4x64xf32>
    %470 = math.tanh %469 : vector<4x64xf32>
    %471 = vector.extract_strided_slice %466 {offsets = [0, 64], sizes = [4, 32], strides = [1, 1]} : vector<4x96xf32> to vector<4x32xf32>
    %472 = arith.addf %471, %319 : vector<4x32xf32>
    %473 = vector.extract_strided_slice %464 {offsets = [0, 64], sizes = [4, 32], strides = [1, 1]} : vector<4x128xf32> to vector<4x32xf32>
    %474 = vector.extract_strided_slice %470 {offsets = [0, 0], sizes = [4, 32], strides = [1, 1]} : vector<4x64xf32> to vector<4x32xf32>
    %cst_89 = arith.constant 1.000000e+00 : f32
    %475 = vector.broadcast %cst_89 : f32 to vector<4x32xf32>
    %476 = arith.addf %474, %475 : vector<4x32xf32>
    %477 = arith.mulf %476, %472 : vector<4x32xf32>
    %478 = arith.addf %473, %477 : vector<4x32xf32>
    %479 = math.tanh %478 : vector<4x32xf32>
    %480 = vector.extract_strided_slice %77 {offsets = [24, 0], sizes = [4, 32], strides = [1, 1]} : vector<32x32xf32> to vector<4x32xf32>
    %481 = vector.extract_strided_slice %470 {offsets = [0, 32], sizes = [4, 32], strides = [1, 1]} : vector<4x64xf32> to vector<4x32xf32>
    %cst_90 = arith.constant 1.000000e+00 : f32
    %482 = vector.broadcast %cst_90 : f32 to vector<4x32xf32>
    %483 = arith.subf %482, %481 : vector<4x32xf32>
    %484 = arith.mulf %480, %483 : vector<4x32xf32>
    %485 = arith.subf %479, %463 : vector<4x32xf32>
    %486 = arith.mulf %484, %485 : vector<4x32xf32>
    %487 = arith.addf %463, %486 : vector<4x32xf32>
    %488 = vector.extract_strided_slice %315 {offsets = [28, 0], sizes = [4, 128], strides = [1, 1]} : vector<32x128xf32> to vector<4x128xf32>
    %489 = arith.truncf %487 : vector<4x32xf32> to vector<4x32xbf16>
    %cst_91 = arith.constant dense<0.000000e+00> : vector<4x96xf32>
    %490 = tpu.matmul %489, %316, %cst_91 {dimension_numbers = #tpu.dot_dimension_numbers<[1], [0], [0], [1], [0, 0, 1, 1], [], []>} : vector<4x32xbf16>, vector<32x96xbf16>, vector<4x96xf32> -> vector<4x96xf32>
    %491 = vector.extract_strided_slice %488 {offsets = [0, 0], sizes = [4, 64], strides = [1, 1]} : vector<4x128xf32> to vector<4x64xf32>
    %492 = vector.extract_strided_slice %490 {offsets = [0, 0], sizes = [4, 64], strides = [1, 1]} : vector<4x96xf32> to vector<4x64xf32>
    %493 = arith.addf %491, %492 : vector<4x64xf32>
    %494 = math.tanh %493 : vector<4x64xf32>
    %495 = vector.extract_strided_slice %490 {offsets = [0, 64], sizes = [4, 32], strides = [1, 1]} : vector<4x96xf32> to vector<4x32xf32>
    %496 = arith.addf %495, %319 : vector<4x32xf32>
    %497 = vector.extract_strided_slice %488 {offsets = [0, 64], sizes = [4, 32], strides = [1, 1]} : vector<4x128xf32> to vector<4x32xf32>
    %498 = vector.extract_strided_slice %494 {offsets = [0, 0], sizes = [4, 32], strides = [1, 1]} : vector<4x64xf32> to vector<4x32xf32>
    %cst_92 = arith.constant 1.000000e+00 : f32
    %499 = vector.broadcast %cst_92 : f32 to vector<4x32xf32>
    %500 = arith.addf %498, %499 : vector<4x32xf32>
    %501 = arith.mulf %500, %496 : vector<4x32xf32>
    %502 = arith.addf %497, %501 : vector<4x32xf32>
    %503 = math.tanh %502 : vector<4x32xf32>
    %504 = vector.extract_strided_slice %77 {offsets = [28, 0], sizes = [4, 32], strides = [1, 1]} : vector<32x32xf32> to vector<4x32xf32>
    %505 = vector.extract_strided_slice %494 {offsets = [0, 32], sizes = [4, 32], strides = [1, 1]} : vector<4x64xf32> to vector<4x32xf32>
    %cst_93 = arith.constant 1.000000e+00 : f32
    %506 = vector.broadcast %cst_93 : f32 to vector<4x32xf32>
    %507 = arith.subf %506, %505 : vector<4x32xf32>
    %508 = arith.mulf %504, %507 : vector<4x32xf32>
    %509 = arith.subf %503, %487 : vector<4x32xf32>
    %510 = arith.mulf %508, %509 : vector<4x32xf32>
    %511 = arith.addf %487, %510 : vector<4x32xf32>
    %512 = tpu.concatenate %343, %367, %391, %415, %439, %463, %487, %511 in 0 : vector<4x32xf32>, vector<4x32xf32>, vector<4x32xf32>, vector<4x32xf32>, vector<4x32xf32>, vector<4x32xf32>, vector<4x32xf32>, vector<4x32xf32> -> vector<32x32xf32>
    %513 = vector.extract_strided_slice %315 {offsets = [0, 96], sizes = [32, 32], strides = [1, 1]} : vector<32x128xf32> to vector<32x32xf32>
    %c256 = arith.constant 256 : index
    %c0_94 = arith.constant 0 : index
    %514 = vector.load %arg1[%c256, %c0_94] : memref<328x128xbf16, #tpu.memory_space<vmem>>, vector<32x32xbf16>
    %515 = arith.truncf %512 : vector<32x32xf32> to vector<32x32xbf16>
    %cst_95 = arith.constant dense<0.000000e+00> : vector<32x32xf32>
    %516 = tpu.matmul %515, %514, %cst_95 {dimension_numbers = #tpu.dot_dimension_numbers<[1], [0], [0], [1], [0, 0, 1, 1], [], []>} : vector<32x32xbf16>, vector<32x32xbf16>, vector<32x32xf32> -> vector<32x32xf32>
    %517 = arith.addf %513, %516 : vector<32x32xf32>
    %c13 = arith.constant 13 : index
    %c0_96 = arith.constant 0 : index
    %518 = vector.load %arg2[%c13, %c0_96] : memref<24x128xf32, #tpu.memory_space<vmem>>, vector<1x32xf32>
    %c14 = arith.constant 14 : index
    %c0_97 = arith.constant 0 : index
    %519 = vector.load %arg2[%c14, %c0_97] : memref<24x128xf32, #tpu.memory_space<vmem>>, vector<1x32xf32>
    %cst_98 = arith.constant dense<0.000000e+00> : vector<32xf32>
    %520 = vector.multi_reduction <add>, %517, %cst_98 [1] : vector<32x32xf32> to vector<32xf32>
    %521 = vector.shape_cast %520 : vector<32xf32> to vector<32x1xf32>
    %cst_99 = arith.constant 3.200000e+01 : f32
    %522 = vector.broadcast %cst_99 : f32 to vector<32x1xf32>
    %523 = arith.divf %521, %522 : vector<32x1xf32>
    %524 = vector.broadcast %523 : vector<32x1xf32> to vector<32x32xf32>
    %525 = arith.subf %517, %524 : vector<32x32xf32>
    %526 = arith.mulf %525, %525 : vector<32x32xf32>
    %cst_100 = arith.constant dense<0.000000e+00> : vector<32xf32>
    %527 = vector.multi_reduction <add>, %526, %cst_100 [1] : vector<32x32xf32> to vector<32xf32>
    %528 = vector.shape_cast %527 : vector<32xf32> to vector<32x1xf32>
    %cst_101 = arith.constant 3.200000e+01 : f32
    %529 = vector.broadcast %cst_101 : f32 to vector<32x1xf32>
    %530 = arith.divf %528, %529 : vector<32x1xf32>
    %531 = vector.broadcast %523 : vector<32x1xf32> to vector<32x32xf32>
    %532 = arith.subf %517, %531 : vector<32x32xf32>
    %cst_102 = arith.constant 9.99999974E-6 : f32
    %533 = vector.broadcast %cst_102 : f32 to vector<32x1xf32>
    %534 = arith.addf %530, %533 : vector<32x1xf32>
    %535 = math.rsqrt %534 : vector<32x1xf32>
    %536 = vector.broadcast %535 : vector<32x1xf32> to vector<32x32xf32>
    %537 = arith.mulf %532, %536 : vector<32x32xf32>
    %538 = vector.broadcast %518 : vector<1x32xf32> to vector<32x32xf32>
    %539 = arith.mulf %537, %538 : vector<32x32xf32>
    %540 = vector.broadcast %519 : vector<1x32xf32> to vector<32x32xf32>
    %541 = arith.addf %539, %540 : vector<32x32xf32>
    %c288 = arith.constant 288 : index
    %c0_103 = arith.constant 0 : index
    %542 = vector.load %arg1[%c288, %c0_103] : memref<328x128xbf16, #tpu.memory_space<vmem>>, vector<32x8xbf16>
    %543 = arith.truncf %541 : vector<32x32xf32> to vector<32x32xbf16>
    %cst_104 = arith.constant dense<0.000000e+00> : vector<32x8xf32>
    %544 = tpu.matmul %543, %542, %cst_104 {dimension_numbers = #tpu.dot_dimension_numbers<[1], [0], [0], [1], [0, 0, 1, 1], [], []>} : vector<32x32xbf16>, vector<32x8xbf16>, vector<32x8xf32> -> vector<32x8xf32>
    %c17 = arith.constant 17 : index
    %c0_105 = arith.constant 0 : index
    %545 = vector.load %arg2[%c17, %c0_105] : memref<24x128xf32, #tpu.memory_space<vmem>>, vector<1x8xf32>
    %546 = vector.broadcast %545 : vector<1x8xf32> to vector<32x8xf32>
    %547 = arith.addf %544, %546 : vector<32x8xf32>
    %cst_106 = arith.constant 0.000000e+00 : f32
    %548 = vector.broadcast %cst_106 : f32 to vector<32x8xf32>
    %549 = arith.maximumf %547, %548 : vector<32x8xf32>
    %c15 = arith.constant 15 : index
    %c0_107 = arith.constant 0 : index
    %550 = vector.load %arg2[%c15, %c0_107] : memref<24x128xf32, #tpu.memory_space<vmem>>, vector<1x8xf32>
    %c16 = arith.constant 16 : index
    %c0_108 = arith.constant 0 : index
    %551 = vector.load %arg2[%c16, %c0_108] : memref<24x128xf32, #tpu.memory_space<vmem>>, vector<1x8xf32>
    %cst_109 = arith.constant dense<0.000000e+00> : vector<32xf32>
    %552 = vector.multi_reduction <add>, %549, %cst_109 [1] : vector<32x8xf32> to vector<32xf32>
    %553 = vector.shape_cast %552 : vector<32xf32> to vector<32x1xf32>
    %cst_110 = arith.constant 8.000000e+00 : f32
    %554 = vector.broadcast %cst_110 : f32 to vector<32x1xf32>
    %555 = arith.divf %553, %554 : vector<32x1xf32>
    %556 = vector.broadcast %555 : vector<32x1xf32> to vector<32x8xf32>
    %557 = arith.subf %549, %556 : vector<32x8xf32>
    %558 = arith.mulf %557, %557 : vector<32x8xf32>
    %cst_111 = arith.constant dense<0.000000e+00> : vector<32xf32>
    %559 = vector.multi_reduction <add>, %558, %cst_111 [1] : vector<32x8xf32> to vector<32xf32>
    %560 = vector.shape_cast %559 : vector<32xf32> to vector<32x1xf32>
    %cst_112 = arith.constant 8.000000e+00 : f32
    %561 = vector.broadcast %cst_112 : f32 to vector<32x1xf32>
    %562 = arith.divf %560, %561 : vector<32x1xf32>
    %563 = vector.broadcast %555 : vector<32x1xf32> to vector<32x8xf32>
    %564 = arith.subf %549, %563 : vector<32x8xf32>
    %cst_113 = arith.constant 9.99999974E-6 : f32
    %565 = vector.broadcast %cst_113 : f32 to vector<32x1xf32>
    %566 = arith.addf %562, %565 : vector<32x1xf32>
    %567 = math.rsqrt %566 : vector<32x1xf32>
    %568 = vector.broadcast %567 : vector<32x1xf32> to vector<32x8xf32>
    %569 = arith.mulf %564, %568 : vector<32x8xf32>
    %570 = vector.broadcast %550 : vector<1x8xf32> to vector<32x8xf32>
    %571 = arith.mulf %569, %570 : vector<32x8xf32>
    %572 = vector.broadcast %551 : vector<1x8xf32> to vector<32x8xf32>
    %573 = arith.addf %571, %572 : vector<32x8xf32>
    %c320 = arith.constant 320 : index
    %c0_114 = arith.constant 0 : index
    %574 = vector.load %arg1[%c320, %c0_114] : memref<328x128xbf16, #tpu.memory_space<vmem>>, vector<8x2xbf16>
    %575 = arith.truncf %573 : vector<32x8xf32> to vector<32x8xbf16>
    %cst_115 = arith.constant dense<0.000000e+00> : vector<32x2xf32>
    %576 = tpu.matmul %575, %574, %cst_115 {dimension_numbers = #tpu.dot_dimension_numbers<[1], [0], [0], [1], [0, 0, 1, 1], [], []>} : vector<32x8xbf16>, vector<8x2xbf16>, vector<32x2xf32> -> vector<32x2xf32>
    %c18 = arith.constant 18 : index
    %c0_116 = arith.constant 0 : index
    %577 = vector.load %arg2[%c18, %c0_116] : memref<24x128xf32, #tpu.memory_space<vmem>>, vector<1x2xf32>
    %578 = vector.broadcast %577 : vector<1x2xf32> to vector<32x2xf32>
    %579 = arith.addf %576, %578 : vector<32x2xf32>
    %c0_117 = arith.constant 0 : index
    %c0_118 = arith.constant 0 : index
    %580 = vector.load %arg3[%c0_117, %c0_118] : memref<32x2xf32, #tpu.memory_space<vmem>>, vector<32x2xf32>
    tpu.vector_store %arg3[%c0_117, %c0_118], %579 {strides = array<i32>} : memref<32x2xf32, #tpu.memory_space<vmem>>, vector<32x2xf32>,
    return
  }
}

</mosaic_0001>

<llo_original>
// kernel: cnngru_forward.1
$region0: #{cnngru_forward.1}
  #allocation0 [shape = 'u32[]', space=smem, size = 0x4, offset = 0x4, fixed_abs, tag = 'smem constant byte address 0x4 - core index']
  #allocation1 [shape = 'u32[72,128]{1,0:T(1,128)}', space=vmem, size = 0x9000, scoped, tag = 'internal scratch']
  %s0 = inlined_call_operand.vmem [shape: f32[32,48], index: 0, kind: input, shape index: {}]
  %s1 = inlined_call_operand.vmem [shape: bf16[328,128], index: 1, kind: input, shape index: {}]
  %s2 = inlined_call_operand.vmem [shape: f32[24,128], index: 2, kind: input, shape index: {}]
  %s3 = inlined_call_operand.vmem [shape: f32[32,2], index: 3, kind: output, shape index: {}]
  %s4 = sld [smem:[#allocation0]]
  $region22: #{cnngru_forward.1} parent=0
    _
  %s6 = ssub.s32 1, %s4
  %s7 = scalar_select 0, %s6, %s4
  // Predicated region
  $region2: #{cnngru_forward.1} parent=0 // pred_check
    _
  $region3: #{cnngru_forward.1} parent=0 // pred_check_branch
    %9 = sbr.rel (0) target = $region5
  $region4: #{cnngru_forward.1} parent=0 // pred_region
    _
  $region5: #{cnngru_forward.1} parent=0 // pred_fallthru
    _
  // Predicated region
  $region6: #{cnngru_forward.1} parent=0 // pred_check
    _
  $region7: #{cnngru_forward.1} parent=0 // pred_check_branch
    %11 = sbr.rel (0) target = $region9
  $region8: #{cnngru_forward.1} parent=0 // pred_region
    _
  $region9: #{cnngru_forward.1} parent=0 // pred_fallthru
    _
  // Predicated region
  $region10: #{cnngru_forward.1} parent=0 // pred_check
    _
  $region11: #{cnngru_forward.1} parent=0 // pred_check_branch
    %13 = sbr.rel (0) target = $region13
  $region12: #{cnngru_forward.1} parent=0 // pred_region
    _
  $region13: #{cnngru_forward.1} parent=0 // pred_fallthru
    _
  %v15 = vld [vmem:[%s0] sm:$0xff]
  %v16 = vld [vmem:[%s0 + $0x8] sm:$0xff]
  %v17 = vld [vmem:[%s0 + $0x10] sm:$0xff]
  %v18 = vld [vmem:[%s0 + $0x18] sm:$0xff]
  %v19 = vld [vmem:[%s1] sm:$0xf]
  %v20 = vld [vmem:[%s1 + $0x4] sm:$0xf]
  %v21 = vld [vmem:[%s1 + $0x8] sm:$0xf]
  %v22 = vld [vmem:[%s1 + $0xc] sm:$0xf]
  %v23 = vld [vmem:[%s1 + $0x10] sm:$0xf]
  %v24 = vld [vmem:[%s1 + $0x14] sm:$0xf]
  %v25 = vpack.c.bf16 %v16, %v15
  %v26 = vpack.c.bf16 %v18, %v17
  %v27 = vld [vmem:[%s2] sm:$0x1]
  %v28 = vperm.slane %v27, 0
  %v35 = vunpack.c.l.b16 %v19
  %v36 = vunpack.c.l.b16 %v20
  %v37 = vunpack.c.l.b16 %v21
  %v38 = vunpack.c.l.b16 %v22
  %v39 = vunpack.c.l.b16 %v23
  %v40 = vunpack.c.l.b16 %v24
  %v41 = vpack.c.b16 %v36, %v35
  %v42 = vpack.c.b16 %v38, %v37
  %v43 = vpack.c.b16 %v40, %v39
  %vm47 = vcmask 392192
  %v49 = vsel %vm47, %v25, 0
  %v52 = vsel %vm47, %v26, 0
  %54 = vmatpush.bf16.msra.mxu0 0
  %55 = vmatpush.bf16.msra.mxu0 0
  %56 = vmatpush.bf16.msra.mxu0 0
  %57 = vmatpush.bf16.msra.mxu0 0
  %58 = vmatpush.bf16.msra.mxu0 0
  %59 = vmatpush.bf16.msra.mxu0 %v43
  %60 = vmatpush.bf16.msra.mxu0 %v42
  %61 = vmatpush.bf16.msra.mxu0 %v41
  %62 = vmatmul.bf16.gmra.mxu0 %v49
  %v63 = vpop.f32.mrf.mxu0
  %v64 = vadd.f32 %v28, %v63
  %v65 = vpop.f32.mrf.mxu0
  %v66 = vadd.f32 %v28, %v65
  %67 = vmatmul.bf16.gmra.mxu0 %v52
  %v68 = vpop.f32.mrf.mxu0
  %v69 = vadd.f32 %v28, %v68
  %v70 = vpop.f32.mrf.mxu0
  %v71 = vadd.f32 %v28, %v70
  %72 = vdwg.mxu0
  %v73 = vld [vmem:[%s1 + $0x18] sm:$0xf]
  %v74 = vld [vmem:[%s1 + $0x1c] sm:$0xf]
  %v75 = vpack.c.bf16 %v66, %v64
  %v76 = vpack.c.bf16 %v71, %v69
  %v77 = vld [vmem:[%s2 + $0x1] sm:$0x1]
  %v78 = vperm.slane %v77, 0
  %v81 = vunpack.c.l.b16 %v73
  %v82 = vunpack.c.l.b16 %v74
  %v83 = vpack.c.b16 %v82, %v81
  %vm85 = vcmask 130048
  %v87 = vsel %vm85, %v75, 0
  %v90 = vsel %vm85, %v76, 0
  %92 = vmatpush.bf16.msra.mxu0 0
  %93 = vmatpush.bf16.msra.mxu0 0
  %94 = vmatpush.bf16.msra.mxu0 0
  %95 = vmatpush.bf16.msra.mxu0 0
  %96 = vmatpush.bf16.msra.mxu0 0
  %97 = vmatpush.bf16.msra.mxu0 0
  %98 = vmatpush.bf16.msra.mxu0 0
  %99 = vmatpush.bf16.msra.mxu0 %v83
  %100 = vmatmul.bf16.gmra.mxu0 %v87
  %v101 = vpop.f32.mrf.mxu0
  %v102 = vadd.f32 %v78, %v101
  %v103 = vpop.f32.mrf.mxu0
  %v104 = vadd.f32 %v78, %v103
  %105 = vmatmul.bf16.gmra.mxu0 %v90
  %v106 = vpop.f32.mrf.mxu0
  %v107 = vadd.f32 %v78, %v106
  %v108 = vpop.f32.mrf.mxu0
  %v109 = vadd.f32 %v78, %v108
  %110 = vdwg.mxu0
  %v111 = vld [vmem:[%s2 + $0x2] sm:$0x1]
  %v112 = vld [vmem:[%s2 + $0x3] sm:$0x1]
  %vm113 = vcmask 261120
  %v114 = vsel %vm113, %v102, 0.0
  %v115 = vsel %vm113, %v104, 0.0
  %v116 = vadd.f32 %v114, %v115
  %v117 = vsel %vm113, %v107, 0.0
  %v118 = vadd.f32 %v116, %v117
  %v119 = vsel %vm113, %v109, 0.0
  %v120 = vadd.f32 %v118, %v119
  %v121 = vrot.slane %v120, 4
  %v122 = vadd.f32 %v120, %v121
  %v123 = vrot.slane %v122, 2
  %v124 = vadd.f32 %v122, %v123
  %v125 = vrot.slane %v124, 1
  %v126 = vadd.f32 %v124, %v125
  %v127 = vrcp.pop 32.0
  %v128 = vmul.f32 32.0, %v127
  %v129 = vsub.f32 1.0, %v128
  %v130 = vmul.f32 %v127, %v129
  %v131 = vadd.f32 %v127, %v130
  %vm132 = vweird.f32 %v127
  %v133 = vsel %vm132, %v127, %v131
  %v134 = vmul.f32 %v126, %v133
  %v135 = vsub.f32 %v102, %v134
  %v136 = vsub.f32 %v104, %v134
  %v137 = vsub.f32 %v107, %v134
  %v138 = vsub.f32 %v109, %v134
  %v139 = vmul.f32 %v135, %v135
  %v140 = vmul.f32 %v136, %v136
  %v141 = vmul.f32 %v137, %v137
  %v142 = vmul.f32 %v138, %v138
  %v143 = vsel %vm113, %v139, 0.0
  %v144 = vsel %vm113, %v140, 0.0
  %v145 = vadd.f32 %v143, %v144
  %v146 = vsel %vm113, %v141, 0.0
  %v147 = vadd.f32 %v145, %v146
  %v148 = vsel %vm113, %v142, 0.0
  %v149 = vadd.f32 %v147, %v148
  %v150 = vrot.slane %v149, 4
  %v151 = vadd.f32 %v149, %v150
  %v152 = vrot.slane %v151, 2
  %v153 = vadd.f32 %v151, %v152
  %v154 = vrot.slane %v153, 1
  %v155 = vadd.f32 %v153, %v154
  %v156 = vmul.f32 %v155, %v133
  %v157 = vadd.f32 %v156, 1e-05
  %v158 = vrsqrt.pop %v157
  %v159 = vmul.f32 %v158, %v157
  %v160 = vmul.f32 %v159, %v158
  %v161 = vmul.f32 0.5, %v160
  %v162 = vsub.f32 1.5, %v161
  %v163 = vmul.f32 %v158, %v162
  %vm164 = vweird.f32 %v157
  %vm165 = vweird.f32 %v158
  %vm166 = vmor %vm164, %vm165
  %v167 = vsel %vm166, %v158, %v163
  %v168 = vmul.f32 %v135, %v167
  %v169 = vmul.f32 %v136, %v167
  %v170 = vmul.f32 %v137, %v167
  %v171 = vmul.f32 %v138, %v167
  %v172 = vperm.slane %v111, 0
  %v173 = vmul.f32 %v168, %v172
  %v174 = vmul.f32 %v169, %v172
  %v175 = vmul.f32 %v170, %v172
  %v176 = vmul.f32 %v171, %v172
  %v177 = vperm.slane %v112, 0
  %v178 = vadd.f32 %v173, %v177
  %v179 = vadd.f32 %v174, %v177
  %v180 = vadd.f32 %v175, %v177
  %v181 = vadd.f32 %v176, %v177
  %v182 = vmax.f32 %v178, 0.0
  %v183 = vmax.f32 %v179, 0.0
  %v184 = vmax.f32 %v180, 0.0
  %v185 = vmax.f32 %v181, 0.0
  %v186 = vld [vmem:[%s1 + $0x20] sm:$0xf]
  %v187 = vld [vmem:[%s1 + $0x24] sm:$0xf]
  %v188 = vld [vmem:[%s1 + $0x28] sm:$0xf]
  %v189 = vld [vmem:[%s1 + $0x2c] sm:$0xf]
  %v190 = vpack.c.bf16 %v183, %v182
  %v191 = vpack.c.bf16 %v185, %v184
  %v192 = vld [vmem:[%s2 + $0x4] sm:$0x1]
  %v193 = vperm.slane %v192, 0
  %v198 = vunpack.c.l.b16 %v186
  %v199 = vunpack.c.l.b16 %v187
  %v200 = vunpack.c.l.b16 %v188
  %v201 = vunpack.c.l.b16 %v189
  %v202 = vpack.c.b16 %v199, %v198
  %v203 = vpack.c.b16 %v201, %v200
  %v207 = vsel %vm113, %v190, 0
  %v210 = vsel %vm113, %v191, 0
  %212 = vmatpush.bf16.msra.mxu0 0
  %213 = vmatpush.bf16.msra.mxu0 0
  %214 = vmatpush.bf16.msra.mxu0 0
  %215 = vmatpush.bf16.msra.mxu0 0
  %216 = vmatpush.bf16.msra.mxu0 0
  %217 = vmatpush.bf16.msra.mxu0 0
  %218 = vmatpush.bf16.msra.mxu0 %v203
  %219 = vmatpush.bf16.msra.mxu0 %v202
  %220 = vmatmul.bf16.gmra.mxu0 %v207
  %v221 = vpop.f32.mrf.mxu0
  %v222 = vadd.f32 %v193, %v221
  %v223 = vpop.f32.mrf.mxu0
  %v224 = vadd.f32 %v193, %v223
  %225 = vmatmul.bf16.gmra.mxu0 %v210
  %v226 = vpop.f32.mrf.mxu0
  %v227 = vadd.f32 %v193, %v226
  %v228 = vpop.f32.mrf.mxu0
  %v229 = vadd.f32 %v193, %v228
  %230 = vdwg.mxu0
  %v231 = vld [vmem:[%s2 + $0x5] sm:$0x1]
  %v232 = vld [vmem:[%s2 + $0x6] sm:$0x1]
  %v233 = vsel %vm113, %v222, 0.0
  %v234 = vsel %vm113, %v224, 0.0
  %v235 = vadd.f32 %v233, %v234
  %v236 = vsel %vm113, %v227, 0.0
  %v237 = vadd.f32 %v235, %v236
  %v238 = vsel %vm113, %v229, 0.0
  %v239 = vadd.f32 %v237, %v238
  %v240 = vrot.slane %v239, 4
  %v241 = vadd.f32 %v239, %v240
  %v242 = vrot.slane %v241, 2
  %v243 = vadd.f32 %v241, %v242
  %v244 = vrot.slane %v243, 1
  %v245 = vadd.f32 %v243, %v244
  %v246 = vmul.f32 %v245, %v133
  %v247 = vsub.f32 %v222, %v246
  %v248 = vsub.f32 %v224, %v246
  %v249 = vsub.f32 %v227, %v246
  %v250 = vsub.f32 %v229, %v246
  %v251 = vmul.f32 %v247, %v247
  %v252 = vmul.f32 %v248, %v248
  %v253 = vmul.f32 %v249, %v249
  %v254 = vmul.f32 %v250, %v250
  %v255 = vsel %vm113, %v251, 0.0
  %v256 = vsel %vm113, %v252, 0.0
  %v257 = vadd.f32 %v255, %v256
  %v258 = vsel %vm113, %v253, 0.0
  %v259 = vadd.f32 %v257, %v258
  %v260 = vsel %vm113, %v254, 0.0
  %v261 = vadd.f32 %v259, %v260
  %v262 = vrot.slane %v261, 4
  %v263 = vadd.f32 %v261, %v262
  %v264 = vrot.slane %v263, 2
  %v265 = vadd.f32 %v263, %v264
  %v266 = vrot.slane %v265, 1
  %v267 = vadd.f32 %v265, %v266
  %v268 = vmul.f32 %v267, %v133
  %v269 = vadd.f32 %v268, 1e-05
  %v270 = vrsqrt.pop %v269
  %v271 = vmul.f32 %v270, %v269
  %v272 = vmul.f32 %v271, %v270
  %v273 = vmul.f32 0.5, %v272
  %v274 = vsub.f32 1.5, %v273
  %v275 = vmul.f32 %v270, %v274
  %vm276 = vweird.f32 %v269
  %vm277 = vweird.f32 %v270
  %vm278 = vmor %vm276, %vm277
  %v279 = vsel %vm278, %v270, %v275
  %v280 = vmul.f32 %v247, %v279
  %v281 = vmul.f32 %v248, %v279
  %v282 = vmul.f32 %v249, %v279
  %v283 = vmul.f32 %v250, %v279
  %v284 = vperm.slane %v231, 0
  %v285 = vmul.f32 %v280, %v284
  %v286 = vmul.f32 %v281, %v284
  %v287 = vmul.f32 %v282, %v284
  %v288 = vmul.f32 %v283, %v284
  %v289 = vperm.slane %v232, 0
  %v290 = vadd.f32 %v285, %v289
  %v291 = vadd.f32 %v286, %v289
  %v292 = vadd.f32 %v287, %v289
  %v293 = vadd.f32 %v288, %v289
  %298 = vrot.lane.b32.xlu0 %v64, 112
  %v299 = vpop.permute.xlu0 %298
  %300 = vrot.lane.b32.xlu0 %v66, 112
  %v301 = vpop.permute.xlu0 %300
  %302 = vrot.lane.b32.xlu0 %v69, 112
  %v303 = vpop.permute.xlu0 %302
  %304 = vrot.lane.b32.xlu0 %v71, 112
  %v305 = vpop.permute.xlu0 %304
  %v310 = vadd.f32 %v290, %v299
  %v311 = vadd.f32 %v291, %v301
  %v312 = vadd.f32 %v292, %v303
  %v313 = vadd.f32 %v293, %v305
  %v314 = vmul.f32 %v15, 0.5
  %v315 = vmul.f32 %v16, 0.5
  %v316 = vmul.f32 %v17, 0.5
  %v317 = vmul.f32 %v18, 0.5
  %v318 = vld [vmem:[%s1 + $0x30] sm:$0xf]
  %v319 = vld [vmem:[%s1 + $0x34] sm:$0xf]
  %v320 = vld [vmem:[%s1 + $0x38] sm:$0xf]
  %v321 = vld [vmem:[%s1 + $0x3c] sm:$0xf]
  %v322 = vpack.c.bf16 %v311, %v310
  %v323 = vpack.c.bf16 %v313, %v312
  %v324 = vld [vmem:[%s2 + $0x7] sm:$0x1]
  %v325 = vperm.slane %v324, 0
  %v330 = vunpack.c.l.b16 %v318
  %v331 = vunpack.c.l.b16 %v319
  %v332 = vunpack.c.l.b16 %v320
  %v333 = vunpack.c.l.b16 %v321
  %v334 = vpack.c.b16 %v331, %v330
  %v335 = vpack.c.b16 %v333, %v332
  %v339 = vsel %vm113, %v322, 0
  %v342 = vsel %vm113, %v323, 0
  %344 = vmatpush.bf16.msra.mxu0 0
  %345 = vmatpush.bf16.msra.mxu0 0
  %346 = vmatpush.bf16.msra.mxu0 0
  %347 = vmatpush.bf16.msra.mxu0 0
  %348 = vmatpush.bf16.msra.mxu0 0
  %349 = vmatpush.bf16.msra.mxu0 0
  %350 = vmatpush.bf16.msra.mxu0 %v335
  %351 = vmatpush.bf16.msra.mxu0 %v334
  %352 = vmatmul.bf16.gmra.mxu0 %v339
  %v353 = vpop.f32.mrf.mxu0
  %v354 = vadd.f32 %v325, %v353
  %v355 = vpop.f32.mrf.mxu0
  %v356 = vadd.f32 %v325, %v355
  %357 = vmatmul.bf16.gmra.mxu0 %v342
  %v358 = vpop.f32.mrf.mxu0
  %v359 = vadd.f32 %v325, %v358
  %v360 = vpop.f32.mrf.mxu0
  %v361 = vadd.f32 %v325, %v360
  %362 = vdwg.mxu0
  %v363 = vld [vmem:[%s1 + $0x40] sm:$0xf]
  %v364 = vld [vmem:[%s1 + $0x44] sm:$0xf]
  %v365 = vld [vmem:[%s1 + $0x48] sm:$0xf]
  %v366 = vld [vmem:[%s1 + $0x4c] sm:$0xf]
  %v367 = vld [vmem:[%s2 + $0x8] sm:$0x1]
  %v368 = vperm.slane %v367, 0
  %v369 = vpack.c.bf16 %v64, %v64
  %371 = vrot.lane.b32.xlu0 %v369, 80
  %v372 = vpop.permute.xlu0 %371
  %v377 = vunpack.c.l.b16 %v363
  %v378 = vunpack.c.l.b16 %v364
  %v379 = vunpack.c.l.b16 %v365
  %v380 = vunpack.c.l.b16 %v366
  %v381 = vpack.c.b16 %v378, %v377
  %v382 = vpack.c.b16 %v380, %v379
  %v386 = vsel %vm113, %v372, 0
  %388 = vmatpush.bf16.msra.mxu0 0
  %389 = vmatpush.bf16.msra.mxu0 0
  %390 = vmatpush.bf16.msra.mxu0 0
  %391 = vmatpush.bf16.msra.mxu0 0
  %392 = vmatpush.bf16.msra.mxu0 0
  %393 = vmatpush.bf16.msra.mxu0 0
  %394 = vmatpush.bf16.msra.mxu0 %v382
  %395 = vmatpush.bf16.msra.mxu0 %v381
  %396 = vmatmul.bf16.gmra.mxu0 %v386
  %v397 = vpop.f32.mrf.mxu0
  %v398 = vadd.f32 0.0, %v397
  %v399 = vpop.f32.mrf.mxu0
  %400 = vdwg.mxu0
  %v401 = vadd.f32 %v354, %v398
  %v402 = vtanh.pop %v401
  %404 = vrot.lane.b32.xlu0 %v368, 64
  %v405 = vpop.permute.xlu0 %404
  %v407 = vadd.f32 %v398, %v405
  %v408 = vadd.f32 %v402, 1.0
  %410 = vrot.lane.b32.xlu0 %v407, 64
  %v411 = vpop.permute.xlu0 %410
  %v413 = vmul.f32 %v408, %v411
  %415 = vrot.lane.b32.xlu0 %v413, 64
  %v416 = vpop.permute.xlu0 %415
  %v418 = vadd.f32 %v354, %v416
  %v419 = vtanh.pop %v418
  %421 = vset.pattern.permute.xlu0 40
  %422 = vperm.xlu0 %421, %v314
  %v423 = vpop.permute.xlu0 %422
  %v425 = vsub.f32 1.0, %v402
  %v426 = vmul.f32 %v423, %v425
  %427 = vrot.lane.b32.xlu0 %v64, 16
  %v428 = vpop.permute.xlu0 %427
  %v430 = vsub.f32 %v419, %v428
  %432 = vrot.lane.b32.xlu0 %v430, 96
  %v433 = vpop.permute.xlu0 %432
  %v435 = vmul.f32 %v426, %v433
  %437 = vrot.lane.b32.xlu0 %v435, 16
  %v438 = vpop.permute.xlu0 %437
  %v440 = vadd.f32 %v64, %v438
  %v441 = vpack.c.bf16 %v440, %v440
  %443 = vrot.lane.b32.xlu0 %v441, 80
  %v444 = vpop.permute.xlu0 %443
  %v446 = vsel %vm113, %v444, 0
  %448 = vmatpush.bf16.msra.mxu0 0
  %449 = vmatpush.bf16.msra.mxu0 0
  %450 = vmatpush.bf16.msra.mxu0 0
  %451 = vmatpush.bf16.msra.mxu0 0
  %452 = vmatpush.bf16.msra.mxu0 0
  %453 = vmatpush.bf16.msra.mxu0 0
  %454 = vmatpush.bf16.msra.mxu0 %v382
  %455 = vmatpush.bf16.msra.mxu0 %v381
  %456 = vmatmul.bf16.gmra.mxu0 %v446
  %v457 = vpop.f32.mrf.mxu0
  %v458 = vadd.f32 0.0, %v457
  %v459 = vpop.f32.mrf.mxu0
  %460 = vdwg.mxu0
  %v462 = vrot.slane %v458, 4
  %v464 = vadd.f32 %v354, %v462
  %v465 = vtanh.pop %v464
  %v466 = vadd.f32 %v458, %v405
  %v467 = vadd.f32 %v465, 1.0
  %v469 = vrot.slane %v466, 4
  %470 = vrot.lane.b32.xlu0 %v469, 64
  %v471 = vpop.permute.xlu0 %470
  %v473 = vmul.f32 %v467, %v471
  %475 = vrot.lane.b32.xlu0 %v473, 64
  %v476 = vpop.permute.xlu0 %475
  %v478 = vadd.f32 %v354, %v476
  %v479 = vtanh.pop %v478
  %v480 = vsub.f32 1.0, %v465
  %v481 = vmul.f32 %v423, %v480
  %v483 = vrot.slane %v440, 4
  %484 = vrot.lane.b32.xlu0 %v483, 16
  %v485 = vpop.permute.xlu0 %484
  %v487 = vsub.f32 %v479, %v485
  %489 = vrot.lane.b32.xlu0 %v487, 96
  %v490 = vpop.permute.xlu0 %489
  %v492 = vmul.f32 %v481, %v490
  %v494 = vrot.slane %v492, 4
  %495 = vrot.lane.b32.xlu0 %v494, 16
  %v496 = vpop.permute.xlu0 %495
  %v498 = vadd.f32 %v440, %v496
  %v499 = vpack.c.bf16 %v498, %v498
  %501 = vrot.lane.b32.xlu0 %v499, 80
  %v502 = vpop.permute.xlu0 %501
  %v504 = vsel %vm113, %v502, 0
  %506 = vmatpush.bf16.msra.mxu0 0
  %507 = vmatpush.bf16.msra.mxu0 0
  %508 = vmatpush.bf16.msra.mxu0 0
  %509 = vmatpush.bf16.msra.mxu0 0
  %510 = vmatpush.bf16.msra.mxu0 0
  %511 = vmatpush.bf16.msra.mxu0 0
  %512 = vmatpush.bf16.msra.mxu0 %v382
  %513 = vmatpush.bf16.msra.mxu0 %v381
  %514 = vmatmul.bf16.gmra.mxu0 %v504
  %v515 = vpop.f32.mrf.mxu0
  %v516 = vadd.f32 0.0, %v515
  %v517 = vpop.f32.mrf.mxu0
  %518 = vdwg.mxu0
  %v519 = vadd.f32 %v356, %v516
  %v520 = vtanh.pop %v519
  %v521 = vadd.f32 %v516, %v405
  %v522 = vadd.f32 %v520, 1.0
  %524 = vrot.lane.b32.xlu0 %v521, 64
  %v525 = vpop.permute.xlu0 %524
  %v527 = vmul.f32 %v522, %v525
  %529 = vrot.lane.b32.xlu0 %v527, 64
  %v530 = vpop.permute.xlu0 %529
  %v532 = vadd.f32 %v356, %v530
  %v533 = vtanh.pop %v532
  %535 = vset.pattern.permute.xlu0 40
  %536 = vperm.xlu0 %535, %v315
  %v537 = vpop.permute.xlu0 %536
  %v539 = vsub.f32 1.0, %v520
  %v540 = vmul.f32 %v537, %v539
  %542 = vrot.lane.b32.xlu0 %v498, 16
  %v543 = vpop.permute.xlu0 %542
  %v545 = vsub.f32 %v533, %v543
  %547 = vrot.lane.b32.xlu0 %v545, 96
  %v548 = vpop.permute.xlu0 %547
  %v550 = vmul.f32 %v540, %v548
  %552 = vrot.lane.b32.xlu0 %v550, 16
  %v553 = vpop.permute.xlu0 %552
  %v555 = vadd.f32 %v498, %v553
  %v556 = vpack.c.bf16 %v555, %v555
  %558 = vrot.lane.b32.xlu0 %v556, 80
  %v559 = vpop.permute.xlu0 %558
  %v561 = vsel %vm113, %v559, 0
  %563 = vmatpush.bf16.msra.mxu0 0
  %564 = vmatpush.bf16.msra.mxu0 0
  %565 = vmatpush.bf16.msra.mxu0 0
  %566 = vmatpush.bf16.msra.mxu0 0
  %567 = vmatpush.bf16.msra.mxu0 0
  %568 = vmatpush.bf16.msra.mxu0 0
  %569 = vmatpush.bf16.msra.mxu0 %v382
  %570 = vmatpush.bf16.msra.mxu0 %v381
  %571 = vmatmul.bf16.gmra.mxu0 %v561
  %v572 = vpop.f32.mrf.mxu0
  %v573 = vadd.f32 0.0, %v572
  %v574 = vpop.f32.mrf.mxu0
  %575 = vdwg.mxu0
  %v577 = vrot.slane %v573, 4
  %v579 = vadd.f32 %v356, %v577
  %v580 = vtanh.pop %v579
  %v581 = vadd.f32 %v573, %v405
  %v582 = vadd.f32 %v580, 1.0
  %v584 = vrot.slane %v581, 4
  %585 = vrot.lane.b32.xlu0 %v584, 64
  %v586 = vpop.permute.xlu0 %585
  %v588 = vmul.f32 %v582, %v586
  %590 = vrot.lane.b32.xlu0 %v588, 64
  %v591 = vpop.permute.xlu0 %590
  %v593 = vadd.f32 %v356, %v591
  %v594 = vtanh.pop %v593
  %v595 = vsub.f32 1.0, %v580
  %v596 = vmul.f32 %v537, %v595
  %v598 = vrot.slane %v555, 4
  %599 = vrot.lane.b32.xlu0 %v598, 16
  %v600 = vpop.permute.xlu0 %599
  %v602 = vsub.f32 %v594, %v600
  %604 = vrot.lane.b32.xlu0 %v602, 96
  %v605 = vpop.permute.xlu0 %604
  %v607 = vmul.f32 %v596, %v605
  %v609 = vrot.slane %v607, 4
  %610 = vrot.lane.b32.xlu0 %v609, 16
  %v611 = vpop.permute.xlu0 %610
  %v613 = vadd.f32 %v555, %v611
  %v614 = vpack.c.bf16 %v613, %v613
  %616 = vrot.lane.b32.xlu0 %v614, 80
  %v617 = vpop.permute.xlu0 %616
  %v619 = vsel %vm113, %v617, 0
  %621 = vmatpush.bf16.msra.mxu0 0
  %622 = vmatpush.bf16.msra.mxu0 0
  %623 = vmatpush.bf16.msra.mxu0 0
  %624 = vmatpush.bf16.msra.mxu0 0
  %625 = vmatpush.bf16.msra.mxu0 0
  %626 = vmatpush.bf16.msra.mxu0 0
  %627 = vmatpush.bf16.msra.mxu0 %v382
  %628 = vmatpush.bf16.msra.mxu0 %v381
  %629 = vmatmul.bf16.gmra.mxu0 %v619
  %v630 = vpop.f32.mrf.mxu0
  %v631 = vadd.f32 0.0, %v630
  %v632 = vpop.f32.mrf.mxu0
  %633 = vdwg.mxu0
  %v634 = vadd.f32 %v359, %v631
  %v635 = vtanh.pop %v634
  %v636 = vadd.f32 %v631, %v405
  %v637 = vadd.f32 %v635, 1.0
  %639 = vrot.lane.b32.xlu0 %v636, 64
  %v640 = vpop.permute.xlu0 %639
  %v642 = vmul.f32 %v637, %v640
  %644 = vrot.lane.b32.xlu0 %v642, 64
  %v645 = vpop.permute.xlu0 %644
  %v647 = vadd.f32 %v359, %v645
  %v648 = vtanh.pop %v647
  %650 = vset.pattern.permute.xlu0 40
  %651 = vperm.xlu0 %650, %v316
  %v652 = vpop.permute.xlu0 %651
  %v654 = vsub.f32 1.0, %v635
  %v655 = vmul.f32 %v652, %v654
  %657 = vrot.lane.b32.xlu0 %v613, 16
  %v658 = vpop.permute.xlu0 %657
  %v660 = vsub.f32 %v648, %v658
  %662 = vrot.lane.b32.xlu0 %v660, 96
  %v663 = vpop.permute.xlu0 %662
  %v665 = vmul.f32 %v655, %v663
  %667 = vrot.lane.b32.xlu0 %v665, 16
  %v668 = vpop.permute.xlu0 %667
  %v670 = vadd.f32 %v613, %v668
  %v671 = vpack.c.bf16 %v670, %v670
  %673 = vrot.lane.b32.xlu0 %v671, 80
  %v674 = vpop.permute.xlu0 %673
  %v676 = vsel %vm113, %v674, 0
  %678 = vmatpush.bf16.msra.mxu0 0
  %679 = vmatpush.bf16.msra.mxu0 0
  %680 = vmatpush.bf16.msra.mxu0 0
  %681 = vmatpush.bf16.msra.mxu0 0
  %682 = vmatpush.bf16.msra.mxu0 0
  %683 = vmatpush.bf16.msra.mxu0 0
  %684 = vmatpush.bf16.msra.mxu0 %v382
  %685 = vmatpush.bf16.msra.mxu0 %v381
  %686 = vmatmul.bf16.gmra.mxu0 %v676
  %v687 = vpop.f32.mrf.mxu0
  %v688 = vadd.f32 0.0, %v687
  %v689 = vpop.f32.mrf.mxu0
  %690 = vdwg.mxu0
  %v692 = vrot.slane %v688, 4
  %v694 = vadd.f32 %v359, %v692
  %v695 = vtanh.pop %v694
  %v696 = vadd.f32 %v688, %v405
  %v697 = vadd.f32 %v695, 1.0
  %v699 = vrot.slane %v696, 4
  %700 = vrot.lane.b32.xlu0 %v699, 64
  %v701 = vpop.permute.xlu0 %700
  %v703 = vmul.f32 %v697, %v701
  %705 = vrot.lane.b32.xlu0 %v703, 64
  %v706 = vpop.permute.xlu0 %705
  %v708 = vadd.f32 %v359, %v706
  %v709 = vtanh.pop %v708
  %v710 = vsub.f32 1.0, %v695
  %v711 = vmul.f32 %v652, %v710
  %v713 = vrot.slane %v670, 4
  %714 = vrot.lane.b32.xlu0 %v713, 16
  %v715 = vpop.permute.xlu0 %714
  %v717 = vsub.f32 %v709, %v715
  %719 = vrot.lane.b32.xlu0 %v717, 96
  %v720 = vpop.permute.xlu0 %719
  %v722 = vmul.f32 %v711, %v720
  %v724 = vrot.slane %v722, 4
  %725 = vrot.lane.b32.xlu0 %v724, 16
  %v726 = vpop.permute.xlu0 %725
  %v728 = vadd.f32 %v670, %v726
  %v729 = vpack.c.bf16 %v728, %v728
  %731 = vrot.lane.b32.xlu0 %v729, 80
  %v732 = vpop.permute.xlu0 %731
  %v734 = vsel %vm113, %v732, 0
  %736 = vmatpush.bf16.msra.mxu0 0
  %737 = vmatpush.bf16.msra.mxu0 0
  %738 = vmatpush.bf16.msra.mxu0 0
  %739 = vmatpush.bf16.msra.mxu0 0
  %740 = vmatpush.bf16.msra.mxu0 0
  %741 = vmatpush.bf16.msra.mxu0 0
  %742 = vmatpush.bf16.msra.mxu0 %v382
  %743 = vmatpush.bf16.msra.mxu0 %v381
  %744 = vmatmul.bf16.gmra.mxu0 %v734
  %v745 = vpop.f32.mrf.mxu0
  %v746 = vadd.f32 0.0, %v745
  %v747 = vpop.f32.mrf.mxu0
  %748 = vdwg.mxu0
  %v749 = vadd.f32 %v361, %v746
  %v750 = vtanh.pop %v749
  %v751 = vadd.f32 %v746, %v405
  %v752 = vadd.f32 %v750, 1.0
  %754 = vrot.lane.b32.xlu0 %v751, 64
  %v755 = vpop.permute.xlu0 %754
  %v757 = vmul.f32 %v752, %v755
  %759 = vrot.lane.b32.xlu0 %v757, 64
  %v760 = vpop.permute.xlu0 %759
  %v762 = vadd.f32 %v361, %v760
  %v763 = vtanh.pop %v762
  %765 = vset.pattern.permute.xlu0 40
  %766 = vperm.xlu0 %765, %v317
  %v767 = vpop.permute.xlu0 %766
  %v769 = vsub.f32 1.0, %v750
  %v770 = vmul.f32 %v767, %v769
  %772 = vrot.lane.b32.xlu0 %v728, 16
  %v773 = vpop.permute.xlu0 %772
  %v775 = vsub.f32 %v763, %v773
  %777 = vrot.lane.b32.xlu0 %v775, 96
  %v778 = vpop.permute.xlu0 %777
  %v780 = vmul.f32 %v770, %v778
  %782 = vrot.lane.b32.xlu0 %v780, 16
  %v783 = vpop.permute.xlu0 %782
  %v785 = vadd.f32 %v728, %v783
  %v786 = vpack.c.bf16 %v785, %v785
  %788 = vrot.lane.b32.xlu0 %v786, 80
  %v789 = vpop.permute.xlu0 %788
  %v791 = vsel %vm113, %v789, 0
  %793 = vmatpush.bf16.msra.mxu0 0
  %794 = vmatpush.bf16.msra.mxu0 0
  %795 = vmatpush.bf16.msra.mxu0 0
  %796 = vmatpush.bf16.msra.mxu0 0
  %797 = vmatpush.bf16.msra.mxu0 0
  %798 = vmatpush.bf16.msra.mxu0 0
  %799 = vmatpush.bf16.msra.mxu0 %v382
  %800 = vmatpush.bf16.msra.mxu0 %v381
  %801 = vmatmul.bf16.gmra.mxu0 %v791
  %v802 = vpop.f32.mrf.mxu0
  %v803 = vadd.f32 0.0, %v802
  %v804 = vpop.f32.mrf.mxu0
  %805 = vdwg.mxu0
  %v807 = vrot.slane %v803, 4
  %v809 = vadd.f32 %v361, %v807
  %v810 = vtanh.pop %v809
  %v811 = vadd.f32 %v803, %v405
  %v812 = vadd.f32 %v810, 1.0
  %v814 = vrot.slane %v811, 4
  %815 = vrot.lane.b32.xlu0 %v814, 64
  %v816 = vpop.permute.xlu0 %815
  %v818 = vmul.f32 %v812, %v816
  %820 = vrot.lane.b32.xlu0 %v818, 64
  %v821 = vpop.permute.xlu0 %820
  %v823 = vadd.f32 %v361, %v821
  %v824 = vtanh.pop %v823
  %v825 = vsub.f32 1.0, %v810
  %v826 = vmul.f32 %v767, %v825
  %v828 = vrot.slane %v785, 4
  %829 = vrot.lane.b32.xlu0 %v828, 16
  %v830 = vpop.permute.xlu0 %829
  %v832 = vsub.f32 %v824, %v830
  %834 = vrot.lane.b32.xlu0 %v832, 96
  %v835 = vpop.permute.xlu0 %834
  %v837 = vmul.f32 %v826, %v835
  %v839 = vrot.slane %v837, 4
  %840 = vrot.lane.b32.xlu0 %v839, 16
  %v841 = vpop.permute.xlu0 %840
  %v843 = vadd.f32 %v785, %v841
  %v844 = vrot.slane %v498, 4
  %v846 = vrot.slane %v613, 4
  %v848 = vrot.slane %v728, 4
  %v851 = vrot.slane %v843, 4
  %vm853 = vcmask 1043456
  %v854 = vsel %vm853, %v440, %v844
  %v855 = vsel %vm853, %v555, %v846
  %v856 = vsel %vm853, %v670, %v848
  %v857 = vsel %vm853, %v785, %v851
  %v858 = vld [vmem:[%s1 + $0x50] sm:$0xf]
  %v859 = vld [vmem:[%s1 + $0x54] sm:$0xf]
  %v860 = vld [vmem:[%s1 + $0x58] sm:$0xf]
  %v861 = vld [vmem:[%s1 + $0x5c] sm:$0xf]
  %v862 = vpack.c.bf16 %v855, %v854
  %v863 = vpack.c.bf16 %v857, %v856
  %866 = vrot.lane.b32.xlu0 %v862, 80
  %v867 = vpop.permute.xlu0 %866
  %868 = vrot.lane.b32.xlu0 %v863, 80
  %v869 = vpop.permute.xlu0 %868
  %v874 = vunpack.c.l.b16 %v858
  %v875 = vunpack.c.l.b16 %v859
  %v876 = vunpack.c.l.b16 %v860
  %v877 = vunpack.c.l.b16 %v861
  %v878 = vpack.c.b16 %v875, %v874
  %v879 = vpack.c.b16 %v877, %v876
  %v883 = vsel %vm113, %v867, 0
  %v886 = vsel %vm113, %v869, 0
  %888 = vmatpush.bf16.msra.mxu0 0
  %889 = vmatpush.bf16.msra.mxu0 0
  %890 = vmatpush.bf16.msra.mxu0 0
  %891 = vmatpush.bf16.msra.mxu0 0
  %892 = vmatpush.bf16.msra.mxu0 0
  %893 = vmatpush.bf16.msra.mxu0 0
  %894 = vmatpush.bf16.msra.mxu0 %v879
  %895 = vmatpush.bf16.msra.mxu0 %v878
  %896 = vmatmul.bf16.gmra.mxu0 %v883
  %v897 = vpop.f32.mrf.mxu0
  %v898 = vadd.f32 0.0, %v897
  %v899 = vpop.f32.mrf.mxu0
  %v900 = vadd.f32 0.0, %v899
  %901 = vmatmul.bf16.gmra.mxu0 %v886
  %v902 = vpop.f32.mrf.mxu0
  %v903 = vadd.f32 0.0, %v902
  %v904 = vpop.f32.mrf.mxu0
  %v905 = vadd.f32 0.0, %v904
  %906 = vdwg.mxu0
  %911 = vrot.lane.b32.xlu0 %v898, 96
  %v912 = vpop.permute.xlu0 %911
  %913 = vrot.lane.b32.xlu0 %v900, 96
  %v914 = vpop.permute.xlu0 %913
  %915 = vrot.lane.b32.xlu0 %v903, 96
  %v916 = vpop.permute.xlu0 %915
  %917 = vrot.lane.b32.xlu0 %v905, 96
  %v918 = vpop.permute.xlu0 %917
  %v923 = vadd.f32 %v354, %v912
  %v924 = vadd.f32 %v356, %v914
  %v925 = vadd.f32 %v359, %v916
  %v926 = vadd.f32 %v361, %v918
  %v927 = vld [vmem:[%s2 + $0xb] sm:$0x1]
  %v928 = vld [vmem:[%s2 + $0xc] sm:$0x1]
  %933 = vrot.lane.b32.xlu0 %v923, 32
  %v934 = vpop.permute.xlu0 %933
  %935 = vrot.lane.b32.xlu0 %v924, 32
  %v936 = vpop.permute.xlu0 %935
  %937 = vrot.lane.b32.xlu0 %v925, 32
  %v938 = vpop.permute.xlu0 %937
  %939 = vrot.lane.b32.xlu0 %v926, 32
  %v940 = vpop.permute.xlu0 %939
  %v945 = vsel %vm113, %v934, 0.0
  %946 = vadd.xlane.f32.xlu0 %v945
  %v947 = vpop.xlane.xlu0 %946
  %v948 = vsel %vm113, %v936, 0.0
  %949 = vadd.xlane.f32.xlu0 %v948
  %v950 = vpop.xlane.xlu0 %949
  %v951 = vsel %vm113, %v938, 0.0
  %952 = vadd.xlane.f32.xlu0 %v951
  %v953 = vpop.xlane.xlu0 %952
  %v954 = vsel %vm113, %v940, 0.0
  %955 = vadd.xlane.f32.xlu0 %v954
  %v956 = vpop.xlane.xlu0 %955
  %v957 = vmul.f32 %v947, %v133
  %v958 = vmul.f32 %v950, %v133
  %v959 = vmul.f32 %v953, %v133
  %v960 = vmul.f32 %v956, %v133
  %v961 = vsub.f32 %v923, %v957
  %v962 = vsub.f32 %v924, %v958
  %v963 = vsub.f32 %v925, %v959
  %v964 = vsub.f32 %v926, %v960
  %v965 = vmul.f32 %v961, %v961
  %v966 = vmul.f32 %v962, %v962
  %v967 = vmul.f32 %v963, %v963
  %v968 = vmul.f32 %v964, %v964
  %973 = vrot.lane.b32.xlu0 %v965, 32
  %v974 = vpop.permute.xlu0 %973
  %975 = vrot.lane.b32.xlu0 %v966, 32
  %v976 = vpop.permute.xlu0 %975
  %977 = vrot.lane.b32.xlu0 %v967, 32
  %v978 = vpop.permute.xlu0 %977
  %979 = vrot.lane.b32.xlu0 %v968, 32
  %v980 = vpop.permute.xlu0 %979
  %v985 = vsel %vm113, %v974, 0.0
  %986 = vadd.xlane.f32.xlu0 %v985
  %v987 = vpop.xlane.xlu0 %986
  %v988 = vsel %vm113, %v976, 0.0
  %989 = vadd.xlane.f32.xlu0 %v988
  %v990 = vpop.xlane.xlu0 %989
  %v991 = vsel %vm113, %v978, 0.0
  %992 = vadd.xlane.f32.xlu0 %v991
  %v993 = vpop.xlane.xlu0 %992
  %v994 = vsel %vm113, %v980, 0.0
  %995 = vadd.xlane.f32.xlu0 %v994
  %v996 = vpop.xlane.xlu0 %995
  %v997 = vmul.f32 %v987, %v133
  %v998 = vmul.f32 %v990, %v133
  %v999 = vmul.f32 %v993, %v133
  %v1000 = vmul.f32 %v996, %v133
  %v1001 = vadd.f32 %v997, 1e-05
  %v1002 = vadd.f32 %v998, 1e-05
  %v1003 = vadd.f32 %v999, 1e-05
  %v1004 = vadd.f32 %v1000, 1e-05
  %v1005 = vrsqrt.pop %v1001
  %v1006 = vmul.f32 %v1005, %v1001
  %v1007 = vmul.f32 %v1006, %v1005
  %v1008 = vmul.f32 0.5, %v1007
  %v1009 = vsub.f32 1.5, %v1008
  %v1010 = vmul.f32 %v1005, %v1009
  %vm1011 = vweird.f32 %v1001
  %vm1012 = vweird.f32 %v1005
  %vm1013 = vmor %vm1011, %vm1012
  %v1014 = vsel %vm1013, %v1005, %v1010
  %v1015 = vrsqrt.pop %v1002
  %v1016 = vmul.f32 %v1015, %v1002
  %v1017 = vmul.f32 %v1016, %v1015
  %v1018 = vmul.f32 0.5, %v1017
  %v1019 = vsub.f32 1.5, %v1018
  %v1020 = vmul.f32 %v1015, %v1019
  %vm1021 = vweird.f32 %v1002
  %vm1022 = vweird.f32 %v1015
  %vm1023 = vmor %vm1021, %vm1022
  %v1024 = vsel %vm1023, %v1015, %v1020
  %v1025 = vrsqrt.pop %v1003
  %v1026 = vmul.f32 %v1025, %v1003
  %v1027 = vmul.f32 %v1026, %v1025
  %v1028 = vmul.f32 0.5, %v1027
  %v1029 = vsub.f32 1.5, %v1028
  %v1030 = vmul.f32 %v1025, %v1029
  %vm1031 = vweird.f32 %v1003
  %vm1032 = vweird.f32 %v1025
  %vm1033 = vmor %vm1031, %vm1032
  %v1034 = vsel %vm1033, %v1025, %v1030
  %v1035 = vrsqrt.pop %v1004
  %v1036 = vmul.f32 %v1035, %v1004
  %v1037 = vmul.f32 %v1036, %v1035
  %v1038 = vmul.f32 0.5, %v1037
  %v1039 = vsub.f32 1.5, %v1038
  %v1040 = vmul.f32 %v1035, %v1039
  %vm1041 = vweird.f32 %v1004
  %vm1042 = vweird.f32 %v1035
  %vm1043 = vmor %vm1041, %vm1042
  %v1044 = vsel %vm1043, %v1035, %v1040
  %v1045 = vmul.f32 %v961, %v1014
  %v1046 = vmul.f32 %v962, %v1024
  %v1047 = vmul.f32 %v963, %v1034
  %v1048 = vmul.f32 %v964, %v1044
  %v1049 = vperm.slane %v927, 0
  %1051 = vrot.lane.b32.xlu0 %v1049, 96
  %v1052 = vpop.permute.xlu0 %1051
  %v1054 = vmul.f32 %v1045, %v1052
  %v1055 = vmul.f32 %v1046, %v1052
  %v1056 = vmul.f32 %v1047, %v1052
  %v1057 = vmul.f32 %v1048, %v1052
  %v1058 = vperm.slane %v928, 0
  %1060 = vrot.lane.b32.xlu0 %v1058, 96
  %v1061 = vpop.permute.xlu0 %1060
  %v1063 = vadd.f32 %v1054, %v1061
  %v1064 = vadd.f32 %v1055, %v1061
  %v1065 = vadd.f32 %v1056, %v1061
  %v1066 = vadd.f32 %v1057, %v1061
  %v1067 = vld [vmem:[%s1 + $0x60] sm:$0xf]
  %v1068 = vld [vmem:[%s1 + $0x64] sm:$0xf]
  %v1069 = vld [vmem:[%s1 + $0x68] sm:$0xf]
  %v1070 = vld [vmem:[%s1 + $0x6c] sm:$0xf]
  %v1071 = vpack.c.bf16 %v1064, %v1063
  %v1072 = vpack.c.bf16 %v1066, %v1065
  %v1073 = vld [vmem:[%s2 + $0x9] sm:$0x1]
  %v1074 = vperm.slane %v1073, 0
  %1077 = vrot.lane.b32.xlu0 %v1071, 32
  %v1078 = vpop.permute.xlu0 %1077
  %1079 = vrot.lane.b32.xlu0 %v1072, 32
  %v1080 = vpop.permute.xlu0 %1079
  %v1085 = vunpack.c.l.b16 %v1067
  %v1086 = vunpack.c.l.b16 %v1068
  %v1087 = vunpack.c.l.b16 %v1069
  %v1088 = vunpack.c.l.b16 %v1070
  %v1089 = vpack.c.b16 %v1086, %v1085
  %v1090 = vpack.c.b16 %v1088, %v1087
  %v1094 = vsel %vm113, %v1078, 0
  %v1097 = vsel %vm113, %v1080, 0
  %1099 = vmatpush.bf16.msra.mxu0 0
  %1100 = vmatpush.bf16.msra.mxu0 0
  %1101 = vmatpush.bf16.msra.mxu0 0
  %1102 = vmatpush.bf16.msra.mxu0 0
  %1103 = vmatpush.bf16.msra.mxu0 0
  %1104 = vmatpush.bf16.msra.mxu0 0
  %1105 = vmatpush.bf16.msra.mxu0 %v1090
  %1106 = vmatpush.bf16.msra.mxu0 %v1089
  %1107 = vmatmul.bf16.gmra.mxu0 %v1094
  %v1108 = vpop.f32.mrf.mxu0
  %v1109 = vadd.f32 %v1074, %v1108
  %v1110 = vpop.f32.mrf.mxu0
  %v1111 = vadd.f32 %v1074, %v1110
  %1112 = vmatmul.bf16.gmra.mxu0 %v1097
  %v1113 = vpop.f32.mrf.mxu0
  %v1114 = vadd.f32 %v1074, %v1113
  %v1115 = vpop.f32.mrf.mxu0
  %v1116 = vadd.f32 %v1074, %v1115
  %1117 = vdwg.mxu0
  %v1118 = vld [vmem:[%s1 + $0x70] sm:$0xf]
  %v1119 = vld [vmem:[%s1 + $0x74] sm:$0xf]
  %v1120 = vld [vmem:[%s1 + $0x78] sm:$0xf]
  %v1121 = vld [vmem:[%s1 + $0x7c] sm:$0xf]
  %v1122 = vld [vmem:[%s2 + $0xa] sm:$0x1]
  %v1123 = vperm.slane %v1122, 0
  %v1128 = vunpack.c.l.b16 %v1118
  %v1129 = vunpack.c.l.b16 %v1119
  %v1130 = vunpack.c.l.b16 %v1120
  %v1131 = vunpack.c.l.b16 %v1121
  %v1132 = vpack.c.b16 %v1129, %v1128
  %v1133 = vpack.c.b16 %v1131, %v1130
  %1136 = vmatpush.bf16.msra.mxu0 0
  %1137 = vmatpush.bf16.msra.mxu0 0
  %1138 = vmatpush.bf16.msra.mxu0 0
  %1139 = vmatpush.bf16.msra.mxu0 0
  %1140 = vmatpush.bf16.msra.mxu0 0
  %1141 = vmatpush.bf16.msra.mxu0 0
  %1142 = vmatpush.bf16.msra.mxu0 %v1133
  %1143 = vmatpush.bf16.msra.mxu0 %v1132
  %1144 = vmatmul.bf16.gmra.mxu0 %v386
  %v1145 = vpop.f32.mrf.mxu0
  %v1146 = vadd.f32 0.0, %v1145
  %v1147 = vpop.f32.mrf.mxu0
  %1148 = vdwg.mxu0
  %v1149 = vadd.f32 %v1109, %v1146
  %v1150 = vtanh.pop %v1149
  %1152 = vrot.lane.b32.xlu0 %v1123, 64
  %v1153 = vpop.permute.xlu0 %1152
  %v1155 = vadd.f32 %v1146, %v1153
  %v1156 = vadd.f32 %v1150, 1.0
  %1158 = vrot.lane.b32.xlu0 %v1155, 64
  %v1159 = vpop.permute.xlu0 %1158
  %v1161 = vmul.f32 %v1156, %v1159
  %1163 = vrot.lane.b32.xlu0 %v1161, 64
  %v1164 = vpop.permute.xlu0 %1163
  %v1166 = vadd.f32 %v1109, %v1164
  %v1167 = vtanh.pop %v1166
  %v1168 = vsub.f32 1.0, %v1150
  %v1169 = vmul.f32 %v423, %v1168
  %v1170 = vsub.f32 %v1167, %v428
  %1172 = vrot.lane.b32.xlu0 %v1170, 96
  %v1173 = vpop.permute.xlu0 %1172
  %v1175 = vmul.f32 %v1169, %v1173
  %1177 = vrot.lane.b32.xlu0 %v1175, 16
  %v1178 = vpop.permute.xlu0 %1177
  %v1180 = vadd.f32 %v64, %v1178
  %v1181 = vpack.c.bf16 %v1180, %v1180
  %1183 = vrot.lane.b32.xlu0 %v1181, 80
  %v1184 = vpop.permute.xlu0 %1183
  %v1186 = vsel %vm113, %v1184, 0
  %1188 = vmatpush.bf16.msra.mxu0 0
  %1189 = vmatpush.bf16.msra.mxu0 0
  %1190 = vmatpush.bf16.msra.mxu0 0
  %1191 = vmatpush.bf16.msra.mxu0 0
  %1192 = vmatpush.bf16.msra.mxu0 0
  %1193 = vmatpush.bf16.msra.mxu0 0
  %1194 = vmatpush.bf16.msra.mxu0 %v1133
  %1195 = vmatpush.bf16.msra.mxu0 %v1132
  %1196 = vmatmul.bf16.gmra.mxu0 %v1186
  %v1197 = vpop.f32.mrf.mxu0
  %v1198 = vadd.f32 0.0, %v1197
  %v1199 = vpop.f32.mrf.mxu0
  %1200 = vdwg.mxu0
  %v1202 = vrot.slane %v1198, 4
  %v1204 = vadd.f32 %v1109, %v1202
  %v1205 = vtanh.pop %v1204
  %v1206 = vadd.f32 %v1198, %v1153
  %v1207 = vadd.f32 %v1205, 1.0
  %v1209 = vrot.slane %v1206, 4
  %1210 = vrot.lane.b32.xlu0 %v1209, 64
  %v1211 = vpop.permute.xlu0 %1210
  %v1213 = vmul.f32 %v1207, %v1211
  %1215 = vrot.lane.b32.xlu0 %v1213, 64
  %v1216 = vpop.permute.xlu0 %1215
  %v1218 = vadd.f32 %v1109, %v1216
  %v1219 = vtanh.pop %v1218
  %v1220 = vsub.f32 1.0, %v1205
  %v1221 = vmul.f32 %v423, %v1220
  %v1223 = vrot.slane %v1180, 4
  %1224 = vrot.lane.b32.xlu0 %v1223, 16
  %v1225 = vpop.permute.xlu0 %1224
  %v1227 = vsub.f32 %v1219, %v1225
  %1229 = vrot.lane.b32.xlu0 %v1227, 96
  %v1230 = vpop.permute.xlu0 %1229
  %v1232 = vmul.f32 %v1221, %v1230
  %v1234 = vrot.slane %v1232, 4
  %1235 = vrot.lane.b32.xlu0 %v1234, 16
  %v1236 = vpop.permute.xlu0 %1235
  %v1238 = vadd.f32 %v1180, %v1236
  %v1239 = vpack.c.bf16 %v1238, %v1238
  %1241 = vrot.lane.b32.xlu0 %v1239, 80
  %v1242 = vpop.permute.xlu0 %1241
  %v1244 = vsel %vm113, %v1242, 0
  %1246 = vmatpush.bf16.msra.mxu0 0
  %1247 = vmatpush.bf16.msra.mxu0 0
  %1248 = vmatpush.bf16.msra.mxu0 0
  %1249 = vmatpush.bf16.msra.mxu0 0
  %1250 = vmatpush.bf16.msra.mxu0 0
  %1251 = vmatpush.bf16.msra.mxu0 0
  %1252 = vmatpush.bf16.msra.mxu0 %v1133
  %1253 = vmatpush.bf16.msra.mxu0 %v1132
  %1254 = vmatmul.bf16.gmra.mxu0 %v1244
  %v1255 = vpop.f32.mrf.mxu0
  %v1256 = vadd.f32 0.0, %v1255
  %v1257 = vpop.f32.mrf.mxu0
  %1258 = vdwg.mxu0
  %v1259 = vadd.f32 %v1111, %v1256
  %v1260 = vtanh.pop %v1259
  %v1261 = vadd.f32 %v1256, %v1153
  %v1262 = vadd.f32 %v1260, 1.0
  %1264 = vrot.lane.b32.xlu0 %v1261, 64
  %v1265 = vpop.permute.xlu0 %1264
  %v1267 = vmul.f32 %v1262, %v1265
  %1269 = vrot.lane.b32.xlu0 %v1267, 64
  %v1270 = vpop.permute.xlu0 %1269
  %v1272 = vadd.f32 %v1111, %v1270
  %v1273 = vtanh.pop %v1272
  %v1274 = vsub.f32 1.0, %v1260
  %v1275 = vmul.f32 %v537, %v1274
  %1277 = vrot.lane.b32.xlu0 %v1238, 16
  %v1278 = vpop.permute.xlu0 %1277
  %v1280 = vsub.f32 %v1273, %v1278
  %1282 = vrot.lane.b32.xlu0 %v1280, 96
  %v1283 = vpop.permute.xlu0 %1282
  %v1285 = vmul.f32 %v1275, %v1283
  %1287 = vrot.lane.b32.xlu0 %v1285, 16
  %v1288 = vpop.permute.xlu0 %1287
  %v1290 = vadd.f32 %v1238, %v1288
  %v1291 = vpack.c.bf16 %v1290, %v1290
  %1293 = vrot.lane.b32.xlu0 %v1291, 80
  %v1294 = vpop.permute.xlu0 %1293
  %v1296 = vsel %vm113, %v1294, 0
  %1298 = vmatpush.bf16.msra.mxu0 0
  %1299 = vmatpush.bf16.msra.mxu0 0
  %1300 = vmatpush.bf16.msra.mxu0 0
  %1301 = vmatpush.bf16.msra.mxu0 0
  %1302 = vmatpush.bf16.msra.mxu0 0
  %1303 = vmatpush.bf16.msra.mxu0 0
  %1304 = vmatpush.bf16.msra.mxu0 %v1133
  %1305 = vmatpush.bf16.msra.mxu0 %v1132
  %1306 = vmatmul.bf16.gmra.mxu0 %v1296
  %v1307 = vpop.f32.mrf.mxu0
  %v1308 = vadd.f32 0.0, %v1307
  %v1309 = vpop.f32.mrf.mxu0
  %1310 = vdwg.mxu0
  %v1312 = vrot.slane %v1308, 4
  %v1314 = vadd.f32 %v1111, %v1312
  %v1315 = vtanh.pop %v1314
  %v1316 = vadd.f32 %v1308, %v1153
  %v1317 = vadd.f32 %v1315, 1.0
  %v1319 = vrot.slane %v1316, 4
  %1320 = vrot.lane.b32.xlu0 %v1319, 64
  %v1321 = vpop.permute.xlu0 %1320
  %v1323 = vmul.f32 %v1317, %v1321
  %1325 = vrot.lane.b32.xlu0 %v1323, 64
  %v1326 = vpop.permute.xlu0 %1325
  %v1328 = vadd.f32 %v1111, %v1326
  %v1329 = vtanh.pop %v1328
  %v1330 = vsub.f32 1.0, %v1315
  %v1331 = vmul.f32 %v537, %v1330
  %v1333 = vrot.slane %v1290, 4
  %1334 = vrot.lane.b32.xlu0 %v1333, 16
  %v1335 = vpop.permute.xlu0 %1334
  %v1337 = vsub.f32 %v1329, %v1335
  %1339 = vrot.lane.b32.xlu0 %v1337, 96
  %v1340 = vpop.permute.xlu0 %1339
  %v1342 = vmul.f32 %v1331, %v1340
  %v1344 = vrot.slane %v1342, 4
  %1345 = vrot.lane.b32.xlu0 %v1344, 16
  %v1346 = vpop.permute.xlu0 %1345
  %v1348 = vadd.f32 %v1290, %v1346
  %v1349 = vpack.c.bf16 %v1348, %v1348
  %1351 = vrot.lane.b32.xlu0 %v1349, 80
  %v1352 = vpop.permute.xlu0 %1351
  %v1354 = vsel %vm113, %v1352, 0
  %1356 = vmatpush.bf16.msra.mxu0 0
  %1357 = vmatpush.bf16.msra.mxu0 0
  %1358 = vmatpush.bf16.msra.mxu0 0
  %1359 = vmatpush.bf16.msra.mxu0 0
  %1360 = vmatpush.bf16.msra.mxu0 0
  %1361 = vmatpush.bf16.msra.mxu0 0
  %1362 = vmatpush.bf16.msra.mxu0 %v1133
  %1363 = vmatpush.bf16.msra.mxu0 %v1132
  %1364 = vmatmul.bf16.gmra.mxu0 %v1354
  %v1365 = vpop.f32.mrf.mxu0
  %v1366 = vadd.f32 0.0, %v1365
  %v1367 = vpop.f32.mrf.mxu0
  %1368 = vdwg.mxu0
  %v1369 = vadd.f32 %v1114, %v1366
  %v1370 = vtanh.pop %v1369
  %v1371 = vadd.f32 %v1366, %v1153
  %v1372 = vadd.f32 %v1370, 1.0
  %1374 = vrot.lane.b32.xlu0 %v1371, 64
  %v1375 = vpop.permute.xlu0 %1374
  %v1377 = vmul.f32 %v1372, %v1375
  %1379 = vrot.lane.b32.xlu0 %v1377, 64
  %v1380 = vpop.permute.xlu0 %1379
  %v1382 = vadd.f32 %v1114, %v1380
  %v1383 = vtanh.pop %v1382
  %v1384 = vsub.f32 1.0, %v1370
  %v1385 = vmul.f32 %v652, %v1384
  %1387 = vrot.lane.b32.xlu0 %v1348, 16
  %v1388 = vpop.permute.xlu0 %1387
  %v1390 = vsub.f32 %v1383, %v1388
  %1392 = vrot.lane.b32.xlu0 %v1390, 96
  %v1393 = vpop.permute.xlu0 %1392
  %v1395 = vmul.f32 %v1385, %v1393
  %1397 = vrot.lane.b32.xlu0 %v1395, 16
  %v1398 = vpop.permute.xlu0 %1397
  %v1400 = vadd.f32 %v1348, %v1398
  %v1401 = vpack.c.bf16 %v1400, %v1400
  %1403 = vrot.lane.b32.xlu0 %v1401, 80
  %v1404 = vpop.permute.xlu0 %1403
  %v1406 = vsel %vm113, %v1404, 0
  %1408 = vmatpush.bf16.msra.mxu0 0
  %1409 = vmatpush.bf16.msra.mxu0 0
  %1410 = vmatpush.bf16.msra.mxu0 0
  %1411 = vmatpush.bf16.msra.mxu0 0
  %1412 = vmatpush.bf16.msra.mxu0 0
  %1413 = vmatpush.bf16.msra.mxu0 0
  %1414 = vmatpush.bf16.msra.mxu0 %v1133
  %1415 = vmatpush.bf16.msra.mxu0 %v1132
  %1416 = vmatmul.bf16.gmra.mxu0 %v1406
  %v1417 = vpop.f32.mrf.mxu0
  %v1418 = vadd.f32 0.0, %v1417
  %v1419 = vpop.f32.mrf.mxu0
  %1420 = vdwg.mxu0
  %v1422 = vrot.slane %v1418, 4
  %v1424 = vadd.f32 %v1114, %v1422
  %v1425 = vtanh.pop %v1424
  %v1426 = vadd.f32 %v1418, %v1153
  %v1427 = vadd.f32 %v1425, 1.0
  %v1429 = vrot.slane %v1426, 4
  %1430 = vrot.lane.b32.xlu0 %v1429, 64
  %v1431 = vpop.permute.xlu0 %1430
  %v1433 = vmul.f32 %v1427, %v1431
  %1435 = vrot.lane.b32.xlu0 %v1433, 64
  %v1436 = vpop.permute.xlu0 %1435
  %v1438 = vadd.f32 %v1114, %v1436
  %v1439 = vtanh.pop %v1438
  %v1440 = vsub.f32 1.0, %v1425
  %v1441 = vmul.f32 %v652, %v1440
  %v1443 = vrot.slane %v1400, 4
  %1444 = vrot.lane.b32.xlu0 %v1443, 16
  %v1445 = vpop.permute.xlu0 %1444
  %v1447 = vsub.f32 %v1439, %v1445
  %1449 = vrot.lane.b32.xlu0 %v1447, 96
  %v1450 = vpop.permute.xlu0 %1449
  %v1452 = vmul.f32 %v1441, %v1450
  %v1454 = vrot.slane %v1452, 4
  %1455 = vrot.lane.b32.xlu0 %v1454, 16
  %v1456 = vpop.permute.xlu0 %1455
  %v1458 = vadd.f32 %v1400, %v1456
  %v1459 = vpack.c.bf16 %v1458, %v1458
  %1461 = vrot.lane.b32.xlu0 %v1459, 80
  %v1462 = vpop.permute.xlu0 %1461
  %v1464 = vsel %vm113, %v1462, 0
  %1466 = vmatpush.bf16.msra.mxu0 0
  %1467 = vmatpush.bf16.msra.mxu0 0
  %1468 = vmatpush.bf16.msra.mxu0 0
  %1469 = vmatpush.bf16.msra.mxu0 0
  %1470 = vmatpush.bf16.msra.mxu0 0
  %1471 = vmatpush.bf16.msra.mxu0 0
  %1472 = vmatpush.bf16.msra.mxu0 %v1133
  %1473 = vmatpush.bf16.msra.mxu0 %v1132
  %1474 = vmatmul.bf16.gmra.mxu0 %v1464
  %v1475 = vpop.f32.mrf.mxu0
  %v1476 = vadd.f32 0.0, %v1475
  %v1477 = vpop.f32.mrf.mxu0
  %1478 = vdwg.mxu0
  %v1479 = vadd.f32 %v1116, %v1476
  %v1480 = vtanh.pop %v1479
  %v1481 = vadd.f32 %v1476, %v1153
  %v1482 = vadd.f32 %v1480, 1.0
  %1484 = vrot.lane.b32.xlu0 %v1481, 64
  %v1485 = vpop.permute.xlu0 %1484
  %v1487 = vmul.f32 %v1482, %v1485
  %1489 = vrot.lane.b32.xlu0 %v1487, 64
  %v1490 = vpop.permute.xlu0 %1489
  %v1492 = vadd.f32 %v1116, %v1490
  %v1493 = vtanh.pop %v1492
  %v1494 = vsub.f32 1.0, %v1480
  %v1495 = vmul.f32 %v767, %v1494
  %1497 = vrot.lane.b32.xlu0 %v1458, 16
  %v1498 = vpop.permute.xlu0 %1497
  %v1500 = vsub.f32 %v1493, %v1498
  %1502 = vrot.lane.b32.xlu0 %v1500, 96
  %v1503 = vpop.permute.xlu0 %1502
  %v1505 = vmul.f32 %v1495, %v1503
  %1507 = vrot.lane.b32.xlu0 %v1505, 16
  %v1508 = vpop.permute.xlu0 %1507
  %v1510 = vadd.f32 %v1458, %v1508
  %v1511 = vpack.c.bf16 %v1510, %v1510
  %1513 = vrot.lane.b32.xlu0 %v1511, 80
  %v1514 = vpop.permute.xlu0 %1513
  %v1516 = vsel %vm113, %v1514, 0
  %1518 = vmatpush.bf16.msra.mxu0 0
  %1519 = vmatpush.bf16.msra.mxu0 0
  %1520 = vmatpush.bf16.msra.mxu0 0
  %1521 = vmatpush.bf16.msra.mxu0 0
  %1522 = vmatpush.bf16.msra.mxu0 0
  %1523 = vmatpush.bf16.msra.mxu0 0
  %1524 = vmatpush.bf16.msra.mxu0 %v1133
  %1525 = vmatpush.bf16.msra.mxu0 %v1132
  %1526 = vmatmul.bf16.gmra.mxu0 %v1516
  %v1527 = vpop.f32.mrf.mxu0
  %v1528 = vadd.f32 0.0, %v1527
  %v1529 = vpop.f32.mrf.mxu0
  %1530 = vdwg.mxu0
  %v1532 = vrot.slane %v1528, 4
  %v1534 = vadd.f32 %v1116, %v1532
  %v1535 = vtanh.pop %v1534
  %v1536 = vadd.f32 %v1528, %v1153
  %v1537 = vadd.f32 %v1535, 1.0
  %v1539 = vrot.slane %v1536, 4
  %1540 = vrot.lane.b32.xlu0 %v1539, 64
  %v1541 = vpop.permute.xlu0 %1540
  %v1543 = vmul.f32 %v1537, %v1541
  %1545 = vrot.lane.b32.xlu0 %v1543, 64
  %v1546 = vpop.permute.xlu0 %1545
  %v1548 = vadd.f32 %v1116, %v1546
  %v1549 = vtanh.pop %v1548
  %v1550 = vsub.f32 1.0, %v1535
  %v1551 = vmul.f32 %v767, %v1550
  %v1553 = vrot.slane %v1510, 4
  %1554 = vrot.lane.b32.xlu0 %v1553, 16
  %v1555 = vpop.permute.xlu0 %1554
  %v1557 = vsub.f32 %v1549, %v1555
  %1559 = vrot.lane.b32.xlu0 %v1557, 96
  %v1560 = vpop.permute.xlu0 %1559
  %v1562 = vmul.f32 %v1551, %v1560
  %v1564 = vrot.slane %v1562, 4
  %1565 = vrot.lane.b32.xlu0 %v1564, 16
  %v1566 = vpop.permute.xlu0 %1565
  %v1568 = vadd.f32 %v1510, %v1566
  %v1569 = vrot.slane %v1238, 4
  %v1571 = vrot.slane %v1348, 4
  %v1573 = vrot.slane %v1458, 4
  %v1576 = vrot.slane %v1568, 4
  %v1578 = vsel %vm853, %v1180, %v1569
  %v1579 = vsel %vm853, %v1290, %v1571
  %v1580 = vsel %vm853, %v1400, %v1573
  %v1581 = vsel %vm853, %v1510, %v1576
  %v1582 = vld [vmem:[%s1 + $0x80] sm:$0xf]
  %v1583 = vld [vmem:[%s1 + $0x84] sm:$0xf]
  %v1584 = vld [vmem:[%s1 + $0x88] sm:$0xf]
  %v1585 = vld [vmem:[%s1 + $0x8c] sm:$0xf]
  %v1586 = vpack.c.bf16 %v1579, %v1578
  %v1587 = vpack.c.bf16 %v1581, %v1580
  %1590 = vrot.lane.b32.xlu0 %v1586, 80
  %v1591 = vpop.permute.xlu0 %1590
  %1592 = vrot.lane.b32.xlu0 %v1587, 80
  %v1593 = vpop.permute.xlu0 %1592
  %v1598 = vunpack.c.l.b16 %v1582
  %v1599 = vunpack.c.l.b16 %v1583
  %v1600 = vunpack.c.l.b16 %v1584
  %v1601 = vunpack.c.l.b16 %v1585
  %v1602 = vpack.c.b16 %v1599, %v1598
  %v1603 = vpack.c.b16 %v1601, %v1600
  %v1607 = vsel %vm113, %v1591, 0
  %v1610 = vsel %vm113, %v1593, 0
  %1612 = vmatpush.bf16.msra.mxu0 0
  %1613 = vmatpush.bf16.msra.mxu0 0
  %1614 = vmatpush.bf16.msra.mxu0 0
  %1615 = vmatpush.bf16.msra.mxu0 0
  %1616 = vmatpush.bf16.msra.mxu0 0
  %1617 = vmatpush.bf16.msra.mxu0 0
  %1618 = vmatpush.bf16.msra.mxu0 %v1603
  %1619 = vmatpush.bf16.msra.mxu0 %v1602
  %1620 = vmatmul.bf16.gmra.mxu0 %v1607
  %v1621 = vpop.f32.mrf.mxu0
  %v1622 = vadd.f32 0.0, %v1621
  %v1623 = vpop.f32.mrf.mxu0
  %v1624 = vadd.f32 0.0, %v1623
  %1625 = vmatmul.bf16.gmra.mxu0 %v1610
  %v1626 = vpop.f32.mrf.mxu0
  %v1627 = vadd.f32 0.0, %v1626
  %v1628 = vpop.f32.mrf.mxu0
  %v1629 = vadd.f32 0.0, %v1628
  %1630 = vdwg.mxu0
  %1635 = vrot.lane.b32.xlu0 %v1622, 96
  %v1636 = vpop.permute.xlu0 %1635
  %1637 = vrot.lane.b32.xlu0 %v1624, 96
  %v1638 = vpop.permute.xlu0 %1637
  %1639 = vrot.lane.b32.xlu0 %v1627, 96
  %v1640 = vpop.permute.xlu0 %1639
  %1641 = vrot.lane.b32.xlu0 %v1629, 96
  %v1642 = vpop.permute.xlu0 %1641
  %v1647 = vadd.f32 %v1109, %v1636
  %v1648 = vadd.f32 %v1111, %v1638
  %v1649 = vadd.f32 %v1114, %v1640
  %v1650 = vadd.f32 %v1116, %v1642
  %v1651 = vld [vmem:[%s2 + $0xd] sm:$0x1]
  %v1652 = vld [vmem:[%s2 + $0xe] sm:$0x1]
  %1657 = vrot.lane.b32.xlu0 %v1647, 32
  %v1658 = vpop.permute.xlu0 %1657
  %1659 = vrot.lane.b32.xlu0 %v1648, 32
  %v1660 = vpop.permute.xlu0 %1659
  %1661 = vrot.lane.b32.xlu0 %v1649, 32
  %v1662 = vpop.permute.xlu0 %1661
  %1663 = vrot.lane.b32.xlu0 %v1650, 32
  %v1664 = vpop.permute.xlu0 %1663
  %v1669 = vsel %vm113, %v1658, 0.0
  %1670 = vadd.xlane.f32.xlu0 %v1669
  %v1671 = vpop.xlane.xlu0 %1670
  %v1672 = vsel %vm113, %v1660, 0.0
  %1673 = vadd.xlane.f32.xlu0 %v1672
  %v1674 = vpop.xlane.xlu0 %1673
  %v1675 = vsel %vm113, %v1662, 0.0
  %1676 = vadd.xlane.f32.xlu0 %v1675
  %v1677 = vpop.xlane.xlu0 %1676
  %v1678 = vsel %vm113, %v1664, 0.0
  %1679 = vadd.xlane.f32.xlu0 %v1678
  %v1680 = vpop.xlane.xlu0 %1679
  %v1681 = vmul.f32 %v1671, %v133
  %v1682 = vmul.f32 %v1674, %v133
  %v1683 = vmul.f32 %v1677, %v133
  %v1684 = vmul.f32 %v1680, %v133
  %v1685 = vsub.f32 %v1647, %v1681
  %v1686 = vsub.f32 %v1648, %v1682
  %v1687 = vsub.f32 %v1649, %v1683
  %v1688 = vsub.f32 %v1650, %v1684
  %v1689 = vmul.f32 %v1685, %v1685
  %v1690 = vmul.f32 %v1686, %v1686
  %v1691 = vmul.f32 %v1687, %v1687
  %v1692 = vmul.f32 %v1688, %v1688
  %1697 = vrot.lane.b32.xlu0 %v1689, 32
  %v1698 = vpop.permute.xlu0 %1697
  %1699 = vrot.lane.b32.xlu0 %v1690, 32
  %v1700 = vpop.permute.xlu0 %1699
  %1701 = vrot.lane.b32.xlu0 %v1691, 32
  %v1702 = vpop.permute.xlu0 %1701
  %1703 = vrot.lane.b32.xlu0 %v1692, 32
  %v1704 = vpop.permute.xlu0 %1703
  %v1709 = vsel %vm113, %v1698, 0.0
  %1710 = vadd.xlane.f32.xlu0 %v1709
  %v1711 = vpop.xlane.xlu0 %1710
  %v1712 = vsel %vm113, %v1700, 0.0
  %1713 = vadd.xlane.f32.xlu0 %v1712
  %v1714 = vpop.xlane.xlu0 %1713
  %v1715 = vsel %vm113, %v1702, 0.0
  %1716 = vadd.xlane.f32.xlu0 %v1715
  %v1717 = vpop.xlane.xlu0 %1716
  %v1718 = vsel %vm113, %v1704, 0.0
  %1719 = vadd.xlane.f32.xlu0 %v1718
  %v1720 = vpop.xlane.xlu0 %1719
  %v1721 = vmul.f32 %v1711, %v133
  %v1722 = vmul.f32 %v1714, %v133
  %v1723 = vmul.f32 %v1717, %v133
  %v1724 = vmul.f32 %v1720, %v133
  %v1725 = vadd.f32 %v1721, 1e-05
  %v1726 = vadd.f32 %v1722, 1e-05
  %v1727 = vadd.f32 %v1723, 1e-05
  %v1728 = vadd.f32 %v1724, 1e-05
  %v1729 = vrsqrt.pop %v1725
  %v1730 = vmul.f32 %v1729, %v1725
  %v1731 = vmul.f32 %v1730, %v1729
  %v1732 = vmul.f32 0.5, %v1731
  %v1733 = vsub.f32 1.5, %v1732
  %v1734 = vmul.f32 %v1729, %v1733
  %vm1735 = vweird.f32 %v1725
  %vm1736 = vweird.f32 %v1729
  %vm1737 = vmor %vm1735, %vm1736
  %v1738 = vsel %vm1737, %v1729, %v1734
  %v1739 = vrsqrt.pop %v1726
  %v1740 = vmul.f32 %v1739, %v1726
  %v1741 = vmul.f32 %v1740, %v1739
  %v1742 = vmul.f32 0.5, %v1741
  %v1743 = vsub.f32 1.5, %v1742
  %v1744 = vmul.f32 %v1739, %v1743
  %vm1745 = vweird.f32 %v1726
  %vm1746 = vweird.f32 %v1739
  %vm1747 = vmor %vm1745, %vm1746
  %v1748 = vsel %vm1747, %v1739, %v1744
  %v1749 = vrsqrt.pop %v1727
  %v1750 = vmul.f32 %v1749, %v1727
  %v1751 = vmul.f32 %v1750, %v1749
  %v1752 = vmul.f32 0.5, %v1751
  %v1753 = vsub.f32 1.5, %v1752
  %v1754 = vmul.f32 %v1749, %v1753
  %vm1755 = vweird.f32 %v1727
  %vm1756 = vweird.f32 %v1749
  %vm1757 = vmor %vm1755, %vm1756
  %v1758 = vsel %vm1757, %v1749, %v1754
  %v1759 = vrsqrt.pop %v1728
  %v1760 = vmul.f32 %v1759, %v1728
  %v1761 = vmul.f32 %v1760, %v1759
  %v1762 = vmul.f32 0.5, %v1761
  %v1763 = vsub.f32 1.5, %v1762
  %v1764 = vmul.f32 %v1759, %v1763
  %vm1765 = vweird.f32 %v1728
  %vm1766 = vweird.f32 %v1759
  %vm1767 = vmor %vm1765, %vm1766
  %v1768 = vsel %vm1767, %v1759, %v1764
  %v1769 = vmul.f32 %v1685, %v1738
  %v1770 = vmul.f32 %v1686, %v1748
  %v1771 = vmul.f32 %v1687, %v1758
  %v1772 = vmul.f32 %v1688, %v1768
  %v1773 = vperm.slane %v1651, 0
  %1775 = vrot.lane.b32.xlu0 %v1773, 96
  %v1776 = vpop.permute.xlu0 %1775
  %v1778 = vmul.f32 %v1769, %v1776
  %v1779 = vmul.f32 %v1770, %v1776
  %v1780 = vmul.f32 %v1771, %v1776
  %v1781 = vmul.f32 %v1772, %v1776
  %v1782 = vperm.slane %v1652, 0
  %1784 = vrot.lane.b32.xlu0 %v1782, 96
  %v1785 = vpop.permute.xlu0 %1784
  %v1787 = vadd.f32 %v1778, %v1785
  %v1788 = vadd.f32 %v1779, %v1785
  %v1789 = vadd.f32 %v1780, %v1785
  %v1790 = vadd.f32 %v1781, %v1785
  %v1791 = vld [vmem:[%s1 + $0x90] sm:$0xf]
  %v1792 = vld [vmem:[%s1 + $0x94] sm:$0xf]
  %v1793 = vld [vmem:[%s1 + $0x98] sm:$0xf]
  %v1794 = vld [vmem:[%s1 + $0x9c] sm:$0xf]
  %v1795 = vpack.c.bf16 %v1788, %v1787
  %v1796 = vpack.c.bf16 %v1790, %v1789
  %v1797 = vld [vmem:[%s2 + $0x11] sm:$0x1]
  %v1798 = vperm.slane %v1797, 0
  %1801 = vrot.lane.b32.xlu0 %v1795, 32
  %v1802 = vpop.permute.xlu0 %1801
  %1803 = vrot.lane.b32.xlu0 %v1796, 32
  %v1804 = vpop.permute.xlu0 %1803
  %v1809 = vunpack.c.l.b16 %v1791
  %v1810 = vunpack.c.l.b16 %v1792
  %v1811 = vunpack.c.l.b16 %v1793
  %v1812 = vunpack.c.l.b16 %v1794
  %v1813 = vpack.c.b16 %v1810, %v1809
  %v1814 = vpack.c.b16 %v1812, %v1811
  %v1818 = vsel %vm113, %v1802, 0
  %v1821 = vsel %vm113, %v1804, 0
  %1823 = vmatpush.bf16.msra.mxu0 0
  %1824 = vmatpush.bf16.msra.mxu0 0
  %1825 = vmatpush.bf16.msra.mxu0 0
  %1826 = vmatpush.bf16.msra.mxu0 0
  %1827 = vmatpush.bf16.msra.mxu0 0
  %1828 = vmatpush.bf16.msra.mxu0 0
  %1829 = vmatpush.bf16.msra.mxu0 %v1814
  %1830 = vmatpush.bf16.msra.mxu0 %v1813
  %1831 = vmatmul.bf16.gmra.mxu0 %v1818
  %v1832 = vpop.f32.mrf.mxu0
  %v1833 = vadd.f32 %v1798, %v1832
  %v1834 = vpop.f32.mrf.mxu0
  %v1835 = vadd.f32 %v1798, %v1834
  %1836 = vmatmul.bf16.gmra.mxu0 %v1821
  %v1837 = vpop.f32.mrf.mxu0
  %v1838 = vadd.f32 %v1798, %v1837
  %v1839 = vpop.f32.mrf.mxu0
  %v1840 = vadd.f32 %v1798, %v1839
  %1841 = vdwg.mxu0
  %v1842 = vmax.f32 %v1833, 0.0
  %v1843 = vmax.f32 %v1835, 0.0
  %v1844 = vmax.f32 %v1838, 0.0
  %v1845 = vmax.f32 %v1840, 0.0
  %v1846 = vld [vmem:[%s2 + $0xf] sm:$0x1]
  %v1847 = vld [vmem:[%s2 + $0x10] sm:$0x1]
  %vm1848 = vcmask 64512
  %v1849 = vsel %vm1848, %v1842, 0.0
  %1850 = vadd.xlane.f32.xlu0 %v1849
  %v1851 = vpop.xlane.xlu0 %1850
  %v1852 = vsel %vm1848, %v1843, 0.0
  %1853 = vadd.xlane.f32.xlu0 %v1852
  %v1854 = vpop.xlane.xlu0 %1853
  %v1855 = vsel %vm1848, %v1844, 0.0
  %1856 = vadd.xlane.f32.xlu0 %v1855
  %v1857 = vpop.xlane.xlu0 %1856
  %v1858 = vsel %vm1848, %v1845, 0.0
  %1859 = vadd.xlane.f32.xlu0 %v1858
  %v1860 = vpop.xlane.xlu0 %1859
  %v1861 = vrcp.pop 8.0
  %v1862 = vmul.f32 8.0, %v1861
  %v1863 = vsub.f32 1.0, %v1862
  %v1864 = vmul.f32 %v1861, %v1863
  %v1865 = vadd.f32 %v1861, %v1864
  %vm1866 = vweird.f32 %v1861
  %v1867 = vsel %vm1866, %v1861, %v1865
  %v1868 = vmul.f32 %v1851, %v1867
  %v1869 = vmul.f32 %v1854, %v1867
  %v1870 = vmul.f32 %v1857, %v1867
  %v1871 = vmul.f32 %v1860, %v1867
  %v1872 = vsub.f32 %v1842, %v1868
  %v1873 = vsub.f32 %v1843, %v1869
  %v1874 = vsub.f32 %v1844, %v1870
  %v1875 = vsub.f32 %v1845, %v1871
  %v1876 = vmul.f32 %v1872, %v1872
  %v1877 = vmul.f32 %v1873, %v1873
  %v1878 = vmul.f32 %v1874, %v1874
  %v1879 = vmul.f32 %v1875, %v1875
  %v1880 = vsel %vm1848, %v1876, 0.0
  %1881 = vadd.xlane.f32.xlu0 %v1880
  %v1882 = vpop.xlane.xlu0 %1881
  %v1883 = vsel %vm1848, %v1877, 0.0
  %1884 = vadd.xlane.f32.xlu0 %v1883
  %v1885 = vpop.xlane.xlu0 %1884
  %v1886 = vsel %vm1848, %v1878, 0.0
  %1887 = vadd.xlane.f32.xlu0 %v1886
  %v1888 = vpop.xlane.xlu0 %1887
  %v1889 = vsel %vm1848, %v1879, 0.0
  %1890 = vadd.xlane.f32.xlu0 %v1889
  %v1891 = vpop.xlane.xlu0 %1890
  %v1892 = vmul.f32 %v1882, %v1867
  %v1893 = vmul.f32 %v1885, %v1867
  %v1894 = vmul.f32 %v1888, %v1867
  %v1895 = vmul.f32 %v1891, %v1867
  %v1896 = vadd.f32 %v1892, 1e-05
  %v1897 = vadd.f32 %v1893, 1e-05
  %v1898 = vadd.f32 %v1894, 1e-05
  %v1899 = vadd.f32 %v1895, 1e-05
  %v1900 = vrsqrt.pop %v1896
  %v1901 = vmul.f32 %v1900, %v1896
  %v1902 = vmul.f32 %v1901, %v1900
  %v1903 = vmul.f32 0.5, %v1902
  %v1904 = vsub.f32 1.5, %v1903
  %v1905 = vmul.f32 %v1900, %v1904
  %vm1906 = vweird.f32 %v1896
  %vm1907 = vweird.f32 %v1900
  %vm1908 = vmor %vm1906, %vm1907
  %v1909 = vsel %vm1908, %v1900, %v1905
  %v1910 = vrsqrt.pop %v1897
  %v1911 = vmul.f32 %v1910, %v1897
  %v1912 = vmul.f32 %v1911, %v1910
  %v1913 = vmul.f32 0.5, %v1912
  %v1914 = vsub.f32 1.5, %v1913
  %v1915 = vmul.f32 %v1910, %v1914
  %vm1916 = vweird.f32 %v1897
  %vm1917 = vweird.f32 %v1910
  %vm1918 = vmor %vm1916, %vm1917
  %v1919 = vsel %vm1918, %v1910, %v1915
  %v1920 = vrsqrt.pop %v1898
  %v1921 = vmul.f32 %v1920, %v1898
  %v1922 = vmul.f32 %v1921, %v1920
  %v1923 = vmul.f32 0.5, %v1922
  %v1924 = vsub.f32 1.5, %v1923
  %v1925 = vmul.f32 %v1920, %v1924
  %vm1926 = vweird.f32 %v1898
  %vm1927 = vweird.f32 %v1920
  %vm1928 = vmor %vm1926, %vm1927
  %v1929 = vsel %vm1928, %v1920, %v1925
  %v1930 = vrsqrt.pop %v1899
  %v1931 = vmul.f32 %v1930, %v1899
  %v1932 = vmul.f32 %v1931, %v1930
  %v1933 = vmul.f32 0.5, %v1932
  %v1934 = vsub.f32 1.5, %v1933
  %v1935 = vmul.f32 %v1930, %v1934
  %vm1936 = vweird.f32 %v1899
  %vm1937 = vweird.f32 %v1930
  %vm1938 = vmor %vm1936, %vm1937
  %v1939 = vsel %vm1938, %v1930, %v1935
  %v1940 = vmul.f32 %v1872, %v1909
  %v1941 = vmul.f32 %v1873, %v1919
  %v1942 = vmul.f32 %v1874, %v1929
  %v1943 = vmul.f32 %v1875, %v1939
  %v1944 = vperm.slane %v1846, 0
  %v1945 = vmul.f32 %v1940, %v1944
  %v1946 = vmul.f32 %v1941, %v1944
  %v1947 = vmul.f32 %v1942, %v1944
  %v1948 = vmul.f32 %v1943, %v1944
  %v1949 = vperm.slane %v1847, 0
  %v1950 = vadd.f32 %v1945, %v1949
  %v1951 = vadd.f32 %v1946, %v1949
  %v1952 = vadd.f32 %v1947, %v1949
  %v1953 = vadd.f32 %v1948, %v1949
  %v1954 = vld [vmem:[%s1 + $0xa0] sm:$0xf]
  %v1955 = vpack.c.bf16 %v1951, %v1950
  %v1956 = vpack.c.bf16 %v1953, %v1952
  %v1957 = vld [vmem:[%s2 + $0x12] sm:$0x1]
  %v1958 = vperm.slane %v1957, 0
  %v1960 = vsel %vm1848, %v1955, 0
  %v1963 = vsel %vm1848, %v1956, 0
  %v1966 = vsel %vm853, %v1954, 0
  %1968 = vmatpush.bf16.msra.mxu0 0
  %1969 = vmatpush.bf16.msra.mxu0 0
  %1970 = vmatpush.bf16.msra.mxu0 0
  %1971 = vmatpush.bf16.msra.mxu0 0
  %1972 = vmatpush.bf16.msra.mxu0 0
  %1973 = vmatpush.bf16.msra.mxu0 0
  %1974 = vmatpush.bf16.msra.mxu0 0
  %1975 = vmatpush.bf16.msra.mxu0 %v1966
  %1976 = vmatmul.bf16.gmra.mxu0 %v1960
  %v1977 = vpop.f32.mrf.mxu0
  %v1978 = vadd.f32 %v1958, %v1977
  %v1979 = vpop.f32.mrf.mxu0
  %v1980 = vadd.f32 %v1958, %v1979
  %1981 = vmatmul.bf16.gmra.mxu0 %v1963
  %v1982 = vpop.f32.mrf.mxu0
  %v1983 = vadd.f32 %v1958, %v1982
  %v1984 = vpop.f32.mrf.mxu0
  %v1985 = vadd.f32 %v1958, %v1984
  %1986 = vdwg.mxu0
  %vm1987 = vcmask 15360
  %1988 = vst.msk [vmem:[%s3] sm:$0xff] %vm1987, %v1978
  %1989 = vst.msk [vmem:[%s3 + $0x8] sm:$0xff] %vm1987, %v1980
  %1990 = vst.msk [vmem:[%s3 + $0x10] sm:$0xff] %vm1987, %v1983
  %1991 = vst.msk [vmem:[%s3 + $0x18] sm:$0xff] %vm1987, %v1985
  // Predicated region
  $region14: #{cnngru_forward.1} parent=0 // pred_check
    _
  $region15: #{cnngru_forward.1} parent=0 // pred_check_branch
    %1993 = sbr.rel (0) target = $region17
  $region16: #{cnngru_forward.1} parent=0 // pred_region
    _
  $region17: #{cnngru_forward.1} parent=0 // pred_fallthru
    _
  // Predicated region
  $region18: #{cnngru_forward.1} parent=0 // pred_check
    _
  $region19: #{cnngru_forward.1} parent=0 // pred_check_branch
    %1995 = sbr.rel (0) target = $region21
  $region20: #{cnngru_forward.1} parent=0 // pred_region
    _
  $region21: #{cnngru_forward.1} parent=0 // pred_fallthru
    _

</llo_original>
